<compile_context>
chip_gen: v6e
topology: v6e:2x2x1
jax: 0.10.0
libtpu: 0.0.40
codegen_flags: <defaults>
</compile_context>

<pallas_src>
import jax
import jax.numpy as jnp
from jax import lax
from jax.experimental import pallas as pl
from jax.experimental.pallas import tpu as pltpu


# --------------------------------- kernel -----------------------------------

def gcn_kernel(col_ref, row_ref, ew_ref,
               x_ref, w1_ref, b1_ref, w2_ref, b2_ref, out_ref):
    f32 = jnp.float32
    bf16 = jnp.bfloat16

    N = out_ref.shape[0]
    E = col_ref.shape[1]

    # --- graph structure built in-kernel (only tiny index/weight vectors DMA'd) ---
    # destination one-hot, transposed:  colT[i, e] = [col_e == i]      -> [N, E]
    iota_ne = lax.broadcasted_iota(jnp.int32, (N, E), 0)
    colT = (col_ref[...] == iota_ne).astype(bf16)

    # weighted source one-hot:          row_w[e, j] = [row_e == j]*w_e -> [E, N]
    iota_en = lax.broadcasted_iota(jnp.int32, (E, N), 1)
    row_w = (row_ref[...] == iota_en).astype(f32) * ew_ref[...]

    # weighted adjacency: wadj[i, j] = sum_e [col_e==i][row_e==j] * w_e
    # canonical [N,E] @ [E,N] matmul on the MXU (no transposed contraction).
    wadj = jnp.dot(colT, row_w.astype(bf16), preferred_element_type=f32)   # [N, N]

    # weighted out-degree of sources and deg^-1/2, guarded against deg == 0.
    deg_1n = jnp.sum(row_w, axis=0, keepdims=True)                         # [1, N]
    dis_1n = jnp.where(deg_1n > 0.0, lax.rsqrt(deg_1n), 0.0)               # [1, N]
    dis_n1 = jnp.transpose(dis_1n)                                         # [N, 1]

    # fold the symmetric normalization into the adjacency ONCE; reused by both layers.
    nadj = (dis_n1 * wadj * dis_1n).astype(bf16)                           # [N, N]

    def propagate(h):
        # (D^-1/2 A_w D^-1/2) @ h  as a single bf16 MXU matmul, f32 accumulation.
        return jnp.dot(nadj, h.astype(bf16), preferred_element_type=f32)

    # --- conv1: linear -> propagate -> ReLU ---
    h = jnp.dot(x_ref[...], w1_ref[...], preferred_element_type=f32) + b1_ref[...]
    h = jnp.maximum(propagate(h), 0.0)

    # --- conv2: linear -> propagate ---
    h = jnp.dot(h.astype(bf16), w2_ref[...], preferred_element_type=f32) + b2_ref[...]
    out_ref[...] = propagate(h)


# -------------------------------- wrapper ------------------------------------

def two_layer_gcn(x, edge_row, edge_col, edge_weight, params):
    """x: [N, Cin] f32; edge_row/edge_col: [E] int32; edge_weight: [E] f32."""
    N = x.shape[0]
    E = edge_row.shape[0]
    cout = params["w2"].shape[1]

    # Pad E to a multiple of 128 with zero-weight dummy edges (row=col=0, w=0):
    # they contribute nothing to deg or wadj, and keep [*,E] vregs lane-dense.
    e_pad = max(128, -(-E // 128) * 128)
    pad = e_pad - E
    row = jnp.pad(edge_row.astype(jnp.int32), (0, pad))
    col = jnp.pad(edge_col.astype(jnp.int32), (0, pad))
    ew = jnp.pad(edge_weight.astype(jnp.float32), (0, pad))

    col_r = col.reshape(1, e_pad)       # left matmul operand orientation
    row_r = row.reshape(e_pad, 1)       # right matmul operand orientation
    ew_r = ew.reshape(e_pad, 1)

    return pl.pallas_call(
        gcn_kernel,
        out_shape=jax.ShapeDtypeStruct((N, cout), jnp.float32),
        compiler_params=pltpu.CompilerParams(vmem_limit_bytes=64 * 1024 * 1024),
    )(col_r, row_r, ew_r,
      x.astype(jnp.bfloat16),
      params["w1"].astype(jnp.bfloat16), params["b1"].astype(jnp.float32),
      params["w2"].astype(jnp.bfloat16), params["b2"].astype(jnp.float32))


# ---------------------------- parameter init ---------------------------------

def init_params(key, cin, hid, cout):
    k1, k2, k3, k4 = jax.random.split(key, 4)
    s = 0.1
    return {
        "w1": s * jax.random.normal(k1, (cin, hid), jnp.float32),   # [in, out] (pre-transposed)
        "b1": s * jax.random.normal(k2, (1, hid), jnp.float32),
        "w2": s * jax.random.normal(k3, (hid, cout), jnp.float32),
        "b2": s * jax.random.normal(k4, (1, cout), jnp.float32),
    }


# ---------------------- pure-JAX reference (for checking) --------------------

def reference(x, row, col, edge_weight, params):
    N = x.shape[0]

    def conv(h, w, b):
        hl = jnp.dot(h, w, precision=lax.Precision.HIGHEST) + b
        deg = jax.ops.segment_sum(edge_weight, row, num_segments=N)
        dis = deg ** -0.5
        norm = dis[row] * edge_weight * dis[col]
        msgs = norm[:, None] * hl[row]
        return jax.ops.segment_sum(msgs, col, num_segments=N)

    h = jax.nn.relu(conv(x, params["w1"], params["b1"]))
    return conv(h, params["w2"], params["b2"])


# ----------------------------------- main ------------------------------------

if __name__ == "__main__":
    N = 128                 # nodes
    E_RAND = 128            # random edges on top of one self-loop per node
    CIN, HID, COUT = 128, 128, 128

    key = jax.random.PRNGKey(0)
    kx, kr, kc, kw, kp = jax.random.split(key, 5)

    x = jax.random.normal(kx, (N, CIN), jnp.float32)

    # every node gets a self-loop (weighted out-degree > 0), plus random edges.
    row = jnp.concatenate([jnp.arange(N, dtype=jnp.int32),
                           jax.random.randint(kr, (E_RAND,), 0, N, jnp.int32)])
    col = jnp.concatenate([jnp.arange(N, dtype=jnp.int32),
                           jax.random.randint(kc, (E_RAND,), 0, N, jnp.int32)])
    E = row.shape[0]
    edge_weight = jax.random.uniform(kw, (E,), jnp.float32, 0.5, 1.5)

    params = init_params(kp, CIN, HID, COUT)

    out = two_layer_gcn(x, row, col, edge_weight, params)
    out = jax.block_until_ready(out)

    ref = reference(x, row, col, edge_weight, params)
    assert out.shape == (N, COUT)
    max_err = float(jnp.max(jnp.abs(out - ref)))
    assert jnp.allclose(out, ref, rtol=3e-2, atol=3e-2), max_err

    print("KERNEL_OK")
</pallas_src>

<mosaic_0001>
module attributes {stable_mosaic.version = 11 : i64} {
  func.func @gcn_kernel(%arg0: memref<1x256xi32, #tpu.memory_space<vmem>>, %arg1: memref<256x1xi32, #tpu.memory_space<vmem>>, %arg2: memref<256x1xf32, #tpu.memory_space<vmem>>, %arg3: memref<128x128xbf16, #tpu.memory_space<vmem>>, %arg4: memref<128x128xbf16, #tpu.memory_space<vmem>>, %arg5: memref<1x128xf32, #tpu.memory_space<vmem>>, %arg6: memref<128x128xbf16, #tpu.memory_space<vmem>>, %arg7: memref<1x128xf32, #tpu.memory_space<vmem>>, %arg8: memref<128x128xf32, #tpu.memory_space<vmem>>) attributes {dimension_semantics = [], scalar_prefetch = 0 : i64, scratch_operands = 0 : i64, tpu.core_type = #tpu.core_type<tc>} {
    %0 = tpu.iota {dimensions = array<i32: 0>} : vector<128x256xi32>
    %c0 = arith.constant 0 : index
    %c0_0 = arith.constant 0 : index
    %1 = vector.load %arg0[%c0, %c0_0] : memref<1x256xi32, #tpu.memory_space<vmem>>, vector<1x256xi32>
    %2 = vector.broadcast %1 : vector<1x256xi32> to vector<128x256xi32>
    %3 = arith.cmpi eq, %2, %0 : vector<128x256xi32>
    %4 = arith.extui %3 : vector<128x256xi1> to vector<128x256xi32>
    %5 = arith.sitofp %4 : vector<128x256xi32> to vector<128x256xf32>
    %6 = arith.truncf %5 : vector<128x256xf32> to vector<128x256xbf16>
    %7 = tpu.iota {dimensions = array<i32: 1>} : vector<256x128xi32>
    %c0_1 = arith.constant 0 : index
    %c0_2 = arith.constant 0 : index
    %8 = vector.load %arg1[%c0_1, %c0_2] : memref<256x1xi32, #tpu.memory_space<vmem>>, vector<256x1xi32>
    %9 = vector.broadcast %8 : vector<256x1xi32> to vector<256x128xi32>
    %10 = arith.cmpi eq, %9, %7 : vector<256x128xi32>
    %11 = arith.extui %10 : vector<256x128xi1> to vector<256x128xi32>
    %12 = arith.sitofp %11 : vector<256x128xi32> to vector<256x128xf32>
    %c0_3 = arith.constant 0 : index
    %c0_4 = arith.constant 0 : index
    %13 = vector.load %arg2[%c0_3, %c0_4] : memref<256x1xf32, #tpu.memory_space<vmem>>, vector<256x1xf32>
    %14 = vector.broadcast %13 : vector<256x1xf32> to vector<256x128xf32>
    %15 = arith.mulf %12, %14 : vector<256x128xf32>
    %16 = arith.truncf %15 : vector<256x128xf32> to vector<256x128xbf16>
    %cst = arith.constant dense<0.000000e+00> : vector<128x128xf32>
    %17 = tpu.matmul %6, %16, %cst {dimension_numbers = #tpu.dot_dimension_numbers<[1], [0], [0], [1], [0, 0, 1, 1], [], []>} : vector<128x256xbf16>, vector<256x128xbf16>, vector<128x128xf32> -> vector<128x128xf32>
    %cst_5 = arith.constant dense<0.000000e+00> : vector<128xf32>
    %18 = vector.multi_reduction <add>, %15, %cst_5 [0] : vector<256x128xf32> to vector<128xf32>
    %19 = vector.shape_cast %18 : vector<128xf32> to vector<1x128xf32>
    %cst_6 = arith.constant 0.000000e+00 : f32
    %20 = vector.broadcast %cst_6 : f32 to vector<1x128xf32>
    %21 = arith.cmpf ogt, %19, %20 : vector<1x128xf32>
    %22 = math.rsqrt %19 : vector<1x128xf32>
    %cst_7 = arith.constant 0.000000e+00 : f32
    %23 = vector.broadcast %cst_7 : f32 to vector<1x128xf32>
    %24 = arith.select %21, %22, %23 : vector<1x128xi1>, vector<1x128xf32>
    %25 = tpu.transpose %24, [1, 0] : vector<1x128xf32> -> vector<128x1xf32>
    %26 = vector.broadcast %25 : vector<128x1xf32> to vector<128x128xf32>
    %27 = arith.mulf %26, %17 : vector<128x128xf32>
    %28 = vector.broadcast %24 : vector<1x128xf32> to vector<128x128xf32>
    %29 = arith.mulf %27, %28 : vector<128x128xf32>
    %30 = arith.truncf %29 : vector<128x128xf32> to vector<128x128xbf16>
    %c0_8 = arith.constant 0 : index
    %c0_9 = arith.constant 0 : index
    %31 = vector.load %arg3[%c0_8, %c0_9] : memref<128x128xbf16, #tpu.memory_space<vmem>>, vector<128x128xbf16>
    %c0_10 = arith.constant 0 : index
    %c0_11 = arith.constant 0 : index
    %32 = vector.load %arg4[%c0_10, %c0_11] : memref<128x128xbf16, #tpu.memory_space<vmem>>, vector<128x128xbf16>
    %cst_12 = arith.constant dense<0.000000e+00> : vector<128x128xf32>
    %33 = tpu.matmul %31, %32, %cst_12 {dimension_numbers = #tpu.dot_dimension_numbers<[1], [0], [0], [1], [0, 0, 1, 1], [], []>} : vector<128x128xbf16>, vector<128x128xbf16>, vector<128x128xf32> -> vector<128x128xf32>
    %c0_13 = arith.constant 0 : index
    %c0_14 = arith.constant 0 : index
    %34 = vector.load %arg5[%c0_13, %c0_14] : memref<1x128xf32, #tpu.memory_space<vmem>>, vector<1x128xf32>
    %35 = vector.broadcast %34 : vector<1x128xf32> to vector<128x128xf32>
    %36 = arith.addf %33, %35 : vector<128x128xf32>
    %37 = arith.truncf %36 : vector<128x128xf32> to vector<128x128xbf16>
    %cst_15 = arith.constant dense<0.000000e+00> : vector<128x128xf32>
    %38 = tpu.matmul %30, %37, %cst_15 {dimension_numbers = #tpu.dot_dimension_numbers<[1], [0], [0], [1], [0, 0, 1, 1], [], []>} : vector<128x128xbf16>, vector<128x128xbf16>, vector<128x128xf32> -> vector<128x128xf32>
    %cst_16 = arith.constant 0.000000e+00 : f32
    %39 = vector.broadcast %cst_16 : f32 to vector<128x128xf32>
    %40 = arith.maximumf %38, %39 : vector<128x128xf32>
    %41 = arith.truncf %40 : vector<128x128xf32> to vector<128x128xbf16>
    %c0_17 = arith.constant 0 : index
    %c0_18 = arith.constant 0 : index
    %42 = vector.load %arg6[%c0_17, %c0_18] : memref<128x128xbf16, #tpu.memory_space<vmem>>, vector<128x128xbf16>
    %cst_19 = arith.constant dense<0.000000e+00> : vector<128x128xf32>
    %43 = tpu.matmul %41, %42, %cst_19 {dimension_numbers = #tpu.dot_dimension_numbers<[1], [0], [0], [1], [0, 0, 1, 1], [], []>} : vector<128x128xbf16>, vector<128x128xbf16>, vector<128x128xf32> -> vector<128x128xf32>
    %c0_20 = arith.constant 0 : index
    %c0_21 = arith.constant 0 : index
    %44 = vector.load %arg7[%c0_20, %c0_21] : memref<1x128xf32, #tpu.memory_space<vmem>>, vector<1x128xf32>
    %45 = vector.broadcast %44 : vector<1x128xf32> to vector<128x128xf32>
    %46 = arith.addf %43, %45 : vector<128x128xf32>
    %47 = arith.truncf %46 : vector<128x128xf32> to vector<128x128xbf16>
    %cst_22 = arith.constant dense<0.000000e+00> : vector<128x128xf32>
    %48 = tpu.matmul %30, %47, %cst_22 {dimension_numbers = #tpu.dot_dimension_numbers<[1], [0], [0], [1], [0, 0, 1, 1], [], []>} : vector<128x128xbf16>, vector<128x128xbf16>, vector<128x128xf32> -> vector<128x128xf32>
    %c0_23 = arith.constant 0 : index
    %c0_24 = arith.constant 0 : index
    %49 = vector.load %arg8[%c0_23, %c0_24] : memref<128x128xf32, #tpu.memory_space<vmem>>, vector<128x128xf32>
    tpu.vector_store %arg8[%c0_23, %c0_24], %48 {strides = array<i32>} : memref<128x128xf32, #tpu.memory_space<vmem>>, vector<128x128xf32>,
    return
  }
}

</mosaic_0001>

<llo_original>
// kernel: tpu_custom_call.1
$region0: #{tpu_custom_call.1}
  #allocation0 [shape = 'u32[]', space=smem, size = 0x4, offset = 0x4, fixed_abs, tag = 'smem constant byte address 0x4 - core index']
  #allocation1 [shape = 'u32[144,128]{1,0:T(1,128)}', space=vmem, size = 0x12000, scoped, tag = 'internal scratch']
  %s0 = inlined_call_operand.vmem [shape: s32[1,256], index: 0, kind: input, shape index: {}]
  %s1 = inlined_call_operand.vmem [shape: s32[256,1], index: 1, kind: input, shape index: {}]
  %s2 = inlined_call_operand.vmem [shape: f32[256,1], index: 2, kind: input, shape index: {}]
  %s3 = inlined_call_operand.vmem [shape: bf16[128,128], index: 3, kind: input, shape index: {}]
  %s4 = inlined_call_operand.vmem [shape: bf16[128,128], index: 4, kind: input, shape index: {}]
  %s5 = inlined_call_operand.vmem [shape: f32[1,128], index: 5, kind: input, shape index: {}]
  %s6 = inlined_call_operand.vmem [shape: bf16[128,128], index: 6, kind: input, shape index: {}]
  %s7 = inlined_call_operand.vmem [shape: f32[1,128], index: 7, kind: input, shape index: {}]
  %s8 = inlined_call_operand.hbm [shape: f32[128,128], index: 8, kind: output, shape index: {}]
  %s9 = sld [smem:[#allocation0]]
  $region42: #{tpu_custom_call.1} parent=0
    _
  %s11 = ssub.s32 1, %s9
  %s12 = scalar_select 0, %s11, %s9
  $region1: #{tpu_custom_call.1} parent=0
    #allocation2 [shape = 'u8[65536]{0}', space=vmem, size = 0x10000, scoped, tag = 'output window, operand 0, single buffered']
    #allocation3 [shape = 's32[1]{0}', space=sflag, size = 0x4, scoped, tag = 'scoped memory for tpu_custom_call.1']
    %13 = vsyncpa [#allocation3], 0
    // Predicated region
    $region2: #{tpu_custom_call.1} parent=1 // pred_check
      _
    $region3: #{tpu_custom_call.1} parent=1 // pred_check_branch
      %15 = sbr.rel (0) target = $region5
    $region4: #{tpu_custom_call.1} parent=1 // pred_region
      _
    $region5: #{tpu_custom_call.1} parent=1 // pred_fallthru
      _
    // Predicated region
    $region6: #{tpu_custom_call.1} parent=1 // pred_check
      _
    $region7: #{tpu_custom_call.1} parent=1 // pred_check_branch
      %17 = sbr.rel (0) target = $region9
    $region8: #{tpu_custom_call.1} parent=1 // pred_region
      _
    $region9: #{tpu_custom_call.1} parent=1 // pred_fallthru
      _
    // Predicated region
    $region10: #{tpu_custom_call.1} parent=1 // pred_check
      _
    $region11: #{tpu_custom_call.1} parent=1 // pred_check_branch
      %19 = sbr.rel (0) target = $region13
    $region12: #{tpu_custom_call.1} parent=1 // pred_region
      _
    $region13: #{tpu_custom_call.1} parent=1 // pred_fallthru
      _
    // Predicated region
    $region14: #{tpu_custom_call.1} parent=1 // pred_check
      _
    $region15: #{tpu_custom_call.1} parent=1 // pred_check_branch
      %21 = sbr.rel (0) target = $region17
    $region16: #{tpu_custom_call.1} parent=1 // pred_region
      _
    $region17: #{tpu_custom_call.1} parent=1 // pred_fallthru
      _
    // Predicated region
    $region18: #{tpu_custom_call.1} parent=1 // pred_check
      _
    $region19: #{tpu_custom_call.1} parent=1 // pred_check_branch
      %23 = sbr.rel (0) target = $region21
    $region20: #{tpu_custom_call.1} parent=1 // pred_region
      _
    $region21: #{tpu_custom_call.1} parent=1 // pred_fallthru
      _
    // Predicated region
    $region22: #{tpu_custom_call.1} parent=1 // pred_check
      _
    $region23: #{tpu_custom_call.1} parent=1 // pred_check_branch
      %25 = sbr.rel (0) target = $region25
    $region24: #{tpu_custom_call.1} parent=1 // pred_region
      _
    $region25: #{tpu_custom_call.1} parent=1 // pred_fallthru
      _
    // Predicated region
    $region26: #{tpu_custom_call.1} parent=1 // pred_check
      _
    $region27: #{tpu_custom_call.1} parent=1 // pred_check_branch
      %27 = sbr.rel (0) target = $region29
    $region28: #{tpu_custom_call.1} parent=1 // pred_region
      _
    $region29: #{tpu_custom_call.1} parent=1 // pred_fallthru
      _
    // Predicated region
    $region30: #{tpu_custom_call.1} parent=1 // pred_check
      _
    $region31: #{tpu_custom_call.1} parent=1 // pred_check_branch
      %29 = sbr.rel (0) target = $region33
    $region32: #{tpu_custom_call.1} parent=1 // pred_region
      _
    $region33: #{tpu_custom_call.1} parent=1 // pred_fallthru
      _
    %v31 = vlaneseq
    %v32 = vshrl.u32 %v31, 7
    %v33 = vadd.s32 %v32, 8
    %v34 = vadd.s32 %v32, 16
    %v35 = vadd.s32 %v32, 24
    %v36 = vadd.s32 %v32, 32
    %v37 = vadd.s32 %v32, 40
    %v38 = vadd.s32 %v32, 48
    %v39 = vadd.s32 %v32, 56
    %v40 = vadd.s32 %v32, 64
    %v41 = vadd.s32 %v32, 72
    %v42 = vadd.s32 %v32, 80
    %v43 = vadd.s32 %v32, 88
    %v44 = vadd.s32 %v32, 96
    %v45 = vadd.s32 %v32, 104
    %v46 = vadd.s32 %v32, 112
    %v47 = vadd.s32 %v32, 120
    %v48 = vld [vmem:[%s0] sm:$0x3]
    %v49 = vlaneseq
    %v50 = vshrl.u32 %v49, 7
    %v51 = vsub.s32 0, %v50
    %v52 = vrot.slane %v48, %v51
    %v53 = vlaneseq
    %v54 = vshrl.u32 %v53, 7
    %v55 = vsub.s32 1, %v54
    %v56 = vrot.slane %v48, %v55
    %vm57 = vcmp.eq.s32.totalorder %v52, %v32
    %vm58 = vcmp.eq.s32.totalorder %v56, %v32
    %vm59 = vcmp.eq.s32.totalorder %v52, %v33
    %vm60 = vcmp.eq.s32.totalorder %v56, %v33
    %vm61 = vcmp.eq.s32.totalorder %v52, %v34
    %vm62 = vcmp.eq.s32.totalorder %v56, %v34
    %vm63 = vcmp.eq.s32.totalorder %v52, %v35
    %vm64 = vcmp.eq.s32.totalorder %v56, %v35
    %vm65 = vcmp.eq.s32.totalorder %v52, %v36
    %vm66 = vcmp.eq.s32.totalorder %v56, %v36
    %vm67 = vcmp.eq.s32.totalorder %v52, %v37
    %vm68 = vcmp.eq.s32.totalorder %v56, %v37
    %vm69 = vcmp.eq.s32.totalorder %v52, %v38
    %vm70 = vcmp.eq.s32.totalorder %v56, %v38
    %vm71 = vcmp.eq.s32.totalorder %v52, %v39
    %vm72 = vcmp.eq.s32.totalorder %v56, %v39
    %vm73 = vcmp.eq.s32.totalorder %v52, %v40
    %vm74 = vcmp.eq.s32.totalorder %v56, %v40
    %vm75 = vcmp.eq.s32.totalorder %v52, %v41
    %vm76 = vcmp.eq.s32.totalorder %v56, %v41
    %vm77 = vcmp.eq.s32.totalorder %v52, %v42
    %vm78 = vcmp.eq.s32.totalorder %v56, %v42
    %vm79 = vcmp.eq.s32.totalorder %v52, %v43
    %vm80 = vcmp.eq.s32.totalorder %v56, %v43
    %vm81 = vcmp.eq.s32.totalorder %v52, %v44
    %vm82 = vcmp.eq.s32.totalorder %v56, %v44
    %vm83 = vcmp.eq.s32.totalorder %v52, %v45
    %vm84 = vcmp.eq.s32.totalorder %v56, %v45
    %vm85 = vcmp.eq.s32.totalorder %v52, %v46
    %vm86 = vcmp.eq.s32.totalorder %v56, %v46
    %vm87 = vcmp.eq.s32.totalorder %v52, %v47
    %vm88 = vcmp.eq.s32.totalorder %v56, %v47
    %v89 = vsel %vm57, 1, 0
    %v90 = vsel %vm58, 1, 0
    %v91 = vsel %vm59, 1, 0
    %v92 = vsel %vm60, 1, 0
    %v93 = vsel %vm61, 1, 0
    %v94 = vsel %vm62, 1, 0
    %v95 = vsel %vm63, 1, 0
    %v96 = vsel %vm64, 1, 0
    %v97 = vsel %vm65, 1, 0
    %v98 = vsel %vm66, 1, 0
    %v99 = vsel %vm67, 1, 0
    %v100 = vsel %vm68, 1, 0
    %v101 = vsel %vm69, 1, 0
    %v102 = vsel %vm70, 1, 0
    %v103 = vsel %vm71, 1, 0
    %v104 = vsel %vm72, 1, 0
    %v105 = vsel %vm73, 1, 0
    %v106 = vsel %vm74, 1, 0
    %v107 = vsel %vm75, 1, 0
    %v108 = vsel %vm76, 1, 0
    %v109 = vsel %vm77, 1, 0
    %v110 = vsel %vm78, 1, 0
    %v111 = vsel %vm79, 1, 0
    %v112 = vsel %vm80, 1, 0
    %v113 = vsel %vm81, 1, 0
    %v114 = vsel %vm82, 1, 0
    %v115 = vsel %vm83, 1, 0
    %v116 = vsel %vm84, 1, 0
    %v117 = vsel %vm85, 1, 0
    %v118 = vsel %vm86, 1, 0
    %v119 = vsel %vm87, 1, 0
    %v120 = vsel %vm88, 1, 0
    %v121 = vcvt.s32.f32 %v89
    %v122 = vcvt.s32.f32 %v90
    %v123 = vcvt.s32.f32 %v91
    %v124 = vcvt.s32.f32 %v92
    %v125 = vcvt.s32.f32 %v93
    %v126 = vcvt.s32.f32 %v94
    %v127 = vcvt.s32.f32 %v95
    %v128 = vcvt.s32.f32 %v96
    %v129 = vcvt.s32.f32 %v97
    %v130 = vcvt.s32.f32 %v98
    %v131 = vcvt.s32.f32 %v99
    %v132 = vcvt.s32.f32 %v100
    %v133 = vcvt.s32.f32 %v101
    %v134 = vcvt.s32.f32 %v102
    %v135 = vcvt.s32.f32 %v103
    %v136 = vcvt.s32.f32 %v104
    %v137 = vcvt.s32.f32 %v105
    %v138 = vcvt.s32.f32 %v106
    %v139 = vcvt.s32.f32 %v107
    %v140 = vcvt.s32.f32 %v108
    %v141 = vcvt.s32.f32 %v109
    %v142 = vcvt.s32.f32 %v110
    %v143 = vcvt.s32.f32 %v111
    %v144 = vcvt.s32.f32 %v112
    %v145 = vcvt.s32.f32 %v113
    %v146 = vcvt.s32.f32 %v114
    %v147 = vcvt.s32.f32 %v115
    %v148 = vcvt.s32.f32 %v116
    %v149 = vcvt.s32.f32 %v117
    %v150 = vcvt.s32.f32 %v118
    %v151 = vcvt.s32.f32 %v119
    %v152 = vcvt.s32.f32 %v120
    %v153 = vpack.c.bf16 %v123, %v121
    %v154 = vpack.c.bf16 %v124, %v122
    %v155 = vpack.c.bf16 %v127, %v125
    %v156 = vpack.c.bf16 %v128, %v126
    %v157 = vpack.c.bf16 %v131, %v129
    %v158 = vpack.c.bf16 %v132, %v130
    %v159 = vpack.c.bf16 %v135, %v133
    %v160 = vpack.c.bf16 %v136, %v134
    %v161 = vpack.c.bf16 %v139, %v137
    %v162 = vpack.c.bf16 %v140, %v138
    %v163 = vpack.c.bf16 %v143, %v141
    %v164 = vpack.c.bf16 %v144, %v142
    %v165 = vpack.c.bf16 %v147, %v145
    %v166 = vpack.c.bf16 %v148, %v146
    %v167 = vpack.c.bf16 %v151, %v149
    %v168 = vpack.c.bf16 %v152, %v150
    %v169 = vlaneseq
    %v170 = vand.u32 %v169, 127
    %v171 = vld [vmem:[%s1] sm:$0xff]
    %v172 = vld [vmem:[%s1 + $0x8] sm:$0xff]
    %v173 = vld [vmem:[%s1 + $0x10] sm:$0xff]
    %v174 = vld [vmem:[%s1 + $0x18] sm:$0xff]
    %v175 = vld [vmem:[%s1 + $0x20] sm:$0xff]
    %v176 = vld [vmem:[%s1 + $0x28] sm:$0xff]
    %v177 = vld [vmem:[%s1 + $0x30] sm:$0xff]
    %v178 = vld [vmem:[%s1 + $0x38] sm:$0xff]
    %v179 = vld [vmem:[%s1 + $0x40] sm:$0xff]
    %v180 = vld [vmem:[%s1 + $0x48] sm:$0xff]
    %v181 = vld [vmem:[%s1 + $0x50] sm:$0xff]
    %v182 = vld [vmem:[%s1 + $0x58] sm:$0xff]
    %v183 = vld [vmem:[%s1 + $0x60] sm:$0xff]
    %v184 = vld [vmem:[%s1 + $0x68] sm:$0xff]
    %v185 = vld [vmem:[%s1 + $0x70] sm:$0xff]
    %v186 = vld [vmem:[%s1 + $0x78] sm:$0xff]
    %v187 = vld [vmem:[%s1 + $0x80] sm:$0xff]
    %v188 = vld [vmem:[%s1 + $0x88] sm:$0xff]
    %v189 = vld [vmem:[%s1 + $0x90] sm:$0xff]
    %v190 = vld [vmem:[%s1 + $0x98] sm:$0xff]
    %v191 = vld [vmem:[%s1 + $0xa0] sm:$0xff]
    %v192 = vld [vmem:[%s1 + $0xa8] sm:$0xff]
    %v193 = vld [vmem:[%s1 + $0xb0] sm:$0xff]
    %v194 = vld [vmem:[%s1 + $0xb8] sm:$0xff]
    %v195 = vld [vmem:[%s1 + $0xc0] sm:$0xff]
    %v196 = vld [vmem:[%s1 + $0xc8] sm:$0xff]
    %v197 = vld [vmem:[%s1 + $0xd0] sm:$0xff]
    %v198 = vld [vmem:[%s1 + $0xd8] sm:$0xff]
    %v199 = vld [vmem:[%s1 + $0xe0] sm:$0xff]
    %v200 = vld [vmem:[%s1 + $0xe8] sm:$0xff]
    %v201 = vld [vmem:[%s1 + $0xf0] sm:$0xff]
    %v202 = vld [vmem:[%s1 + $0xf8] sm:$0xff]
    %203 = vset.pattern.permute.xlu0 0
    %204 = vperm.xlu0 %203, %v171
    %v205 = vpop.permute.xlu0 %204
    %206 = vset.pattern.permute.xlu0 0
    %207 = vperm.xlu0 %206, %v172
    %v208 = vpop.permute.xlu0 %207
    %209 = vset.pattern.permute.xlu0 0
    %210 = vperm.xlu0 %209, %v173
    %v211 = vpop.permute.xlu0 %210
    %212 = vset.pattern.permute.xlu0 0
    %213 = vperm.xlu0 %212, %v174
    %v214 = vpop.permute.xlu0 %213
    %215 = vset.pattern.permute.xlu0 0
    %216 = vperm.xlu0 %215, %v175
    %v217 = vpop.permute.xlu0 %216
    %218 = vset.pattern.permute.xlu0 0
    %219 = vperm.xlu0 %218, %v176
    %v220 = vpop.permute.xlu0 %219
    %221 = vset.pattern.permute.xlu0 0
    %222 = vperm.xlu0 %221, %v177
    %v223 = vpop.permute.xlu0 %222
    %224 = vset.pattern.permute.xlu0 0
    %225 = vperm.xlu0 %224, %v178
    %v226 = vpop.permute.xlu0 %225
    %227 = vset.pattern.permute.xlu0 0
    %228 = vperm.xlu0 %227, %v179
    %v229 = vpop.permute.xlu0 %228
    %230 = vset.pattern.permute.xlu0 0
    %231 = vperm.xlu0 %230, %v180
    %v232 = vpop.permute.xlu0 %231
    %233 = vset.pattern.permute.xlu0 0
    %234 = vperm.xlu0 %233, %v181
    %v235 = vpop.permute.xlu0 %234
    %236 = vset.pattern.permute.xlu0 0
    %237 = vperm.xlu0 %236, %v182
    %v238 = vpop.permute.xlu0 %237
    %239 = vset.pattern.permute.xlu0 0
    %240 = vperm.xlu0 %239, %v183
    %v241 = vpop.permute.xlu0 %240
    %242 = vset.pattern.permute.xlu0 0
    %243 = vperm.xlu0 %242, %v184
    %v244 = vpop.permute.xlu0 %243
    %245 = vset.pattern.permute.xlu0 0
    %246 = vperm.xlu0 %245, %v185
    %v247 = vpop.permute.xlu0 %246
    %248 = vset.pattern.permute.xlu0 0
    %249 = vperm.xlu0 %248, %v186
    %v250 = vpop.permute.xlu0 %249
    %251 = vset.pattern.permute.xlu0 0
    %252 = vperm.xlu0 %251, %v187
    %v253 = vpop.permute.xlu0 %252
    %254 = vset.pattern.permute.xlu0 0
    %255 = vperm.xlu0 %254, %v188
    %v256 = vpop.permute.xlu0 %255
    %257 = vset.pattern.permute.xlu0 0
    %258 = vperm.xlu0 %257, %v189
    %v259 = vpop.permute.xlu0 %258
    %260 = vset.pattern.permute.xlu0 0
    %261 = vperm.xlu0 %260, %v190
    %v262 = vpop.permute.xlu0 %261
    %263 = vset.pattern.permute.xlu0 0
    %264 = vperm.xlu0 %263, %v191
    %v265 = vpop.permute.xlu0 %264
    %266 = vset.pattern.permute.xlu0 0
    %267 = vperm.xlu0 %266, %v192
    %v268 = vpop.permute.xlu0 %267
    %269 = vset.pattern.permute.xlu0 0
    %270 = vperm.xlu0 %269, %v193
    %v271 = vpop.permute.xlu0 %270
    %272 = vset.pattern.permute.xlu0 0
    %273 = vperm.xlu0 %272, %v194
    %v274 = vpop.permute.xlu0 %273
    %275 = vset.pattern.permute.xlu0 0
    %276 = vperm.xlu0 %275, %v195
    %v277 = vpop.permute.xlu0 %276
    %278 = vset.pattern.permute.xlu0 0
    %279 = vperm.xlu0 %278, %v196
    %v280 = vpop.permute.xlu0 %279
    %281 = vset.pattern.permute.xlu0 0
    %282 = vperm.xlu0 %281, %v197
    %v283 = vpop.permute.xlu0 %282
    %284 = vset.pattern.permute.xlu0 0
    %285 = vperm.xlu0 %284, %v198
    %v286 = vpop.permute.xlu0 %285
    %287 = vset.pattern.permute.xlu0 0
    %288 = vperm.xlu0 %287, %v199
    %v289 = vpop.permute.xlu0 %288
    %290 = vset.pattern.permute.xlu0 0
    %291 = vperm.xlu0 %290, %v200
    %v292 = vpop.permute.xlu0 %291
    %293 = vset.pattern.permute.xlu0 0
    %294 = vperm.xlu0 %293, %v201
    %v295 = vpop.permute.xlu0 %294
    %296 = vset.pattern.permute.xlu0 0
    %297 = vperm.xlu0 %296, %v202
    %v298 = vpop.permute.xlu0 %297
    %vm299 = vcmp.eq.s32.totalorder %v205, %v170
    %vm300 = vcmp.eq.s32.totalorder %v208, %v170
    %vm301 = vcmp.eq.s32.totalorder %v211, %v170
    %vm302 = vcmp.eq.s32.totalorder %v214, %v170
    %vm303 = vcmp.eq.s32.totalorder %v217, %v170
    %vm304 = vcmp.eq.s32.totalorder %v220, %v170
    %vm305 = vcmp.eq.s32.totalorder %v223, %v170
    %vm306 = vcmp.eq.s32.totalorder %v226, %v170
    %vm307 = vcmp.eq.s32.totalorder %v229, %v170
    %vm308 = vcmp.eq.s32.totalorder %v232, %v170
    %vm309 = vcmp.eq.s32.totalorder %v235, %v170
    %vm310 = vcmp.eq.s32.totalorder %v238, %v170
    %vm311 = vcmp.eq.s32.totalorder %v241, %v170
    %vm312 = vcmp.eq.s32.totalorder %v244, %v170
    %vm313 = vcmp.eq.s32.totalorder %v247, %v170
    %vm314 = vcmp.eq.s32.totalorder %v250, %v170
    %vm315 = vcmp.eq.s32.totalorder %v253, %v170
    %vm316 = vcmp.eq.s32.totalorder %v256, %v170
    %vm317 = vcmp.eq.s32.totalorder %v259, %v170
    %vm318 = vcmp.eq.s32.totalorder %v262, %v170
    %vm319 = vcmp.eq.s32.totalorder %v265, %v170
    %vm320 = vcmp.eq.s32.totalorder %v268, %v170
    %vm321 = vcmp.eq.s32.totalorder %v271, %v170
    %vm322 = vcmp.eq.s32.totalorder %v274, %v170
    %vm323 = vcmp.eq.s32.totalorder %v277, %v170
    %vm324 = vcmp.eq.s32.totalorder %v280, %v170
    %vm325 = vcmp.eq.s32.totalorder %v283, %v170
    %vm326 = vcmp.eq.s32.totalorder %v286, %v170
    %vm327 = vcmp.eq.s32.totalorder %v289, %v170
    %vm328 = vcmp.eq.s32.totalorder %v292, %v170
    %vm329 = vcmp.eq.s32.totalorder %v295, %v170
    %vm330 = vcmp.eq.s32.totalorder %v298, %v170
    %v331 = vsel %vm299, 1, 0
    %v332 = vsel %vm300, 1, 0
    %v333 = vsel %vm301, 1, 0
    %v334 = vsel %vm302, 1, 0
    %v335 = vsel %vm303, 1, 0
    %v336 = vsel %vm304, 1, 0
    %v337 = vsel %vm305, 1, 0
    %v338 = vsel %vm306, 1, 0
    %v339 = vsel %vm307, 1, 0
    %v340 = vsel %vm308, 1, 0
    %v341 = vsel %vm309, 1, 0
    %v342 = vsel %vm310, 1, 0
    %v343 = vsel %vm311, 1, 0
    %v344 = vsel %vm312, 1, 0
    %v345 = vsel %vm313, 1, 0
    %v346 = vsel %vm314, 1, 0
    %v347 = vsel %vm315, 1, 0
    %v348 = vsel %vm316, 1, 0
    %v349 = vsel %vm317, 1, 0
    %v350 = vsel %vm318, 1, 0
    %v351 = vsel %vm319, 1, 0
    %v352 = vsel %vm320, 1, 0
    %v353 = vsel %vm321, 1, 0
    %v354 = vsel %vm322, 1, 0
    %v355 = vsel %vm323, 1, 0
    %v356 = vsel %vm324, 1, 0
    %v357 = vsel %vm325, 1, 0
    %v358 = vsel %vm326, 1, 0
    %v359 = vsel %vm327, 1, 0
    %v360 = vsel %vm328, 1, 0
    %v361 = vsel %vm329, 1, 0
    %v362 = vsel %vm330, 1, 0
    %v363 = vcvt.s32.f32 %v331
    %v364 = vcvt.s32.f32 %v332
    %v365 = vcvt.s32.f32 %v333
    %v366 = vcvt.s32.f32 %v334
    %v367 = vcvt.s32.f32 %v335
    %v368 = vcvt.s32.f32 %v336
    %v369 = vcvt.s32.f32 %v337
    %v370 = vcvt.s32.f32 %v338
    %v371 = vcvt.s32.f32 %v339
    %v372 = vcvt.s32.f32 %v340
    %v373 = vcvt.s32.f32 %v341
    %v374 = vcvt.s32.f32 %v342
    %v375 = vcvt.s32.f32 %v343
    %v376 = vcvt.s32.f32 %v344
    %v377 = vcvt.s32.f32 %v345
    %v378 = vcvt.s32.f32 %v346
    %v379 = vcvt.s32.f32 %v347
    %v380 = vcvt.s32.f32 %v348
    %v381 = vcvt.s32.f32 %v349
    %v382 = vcvt.s32.f32 %v350
    %v383 = vcvt.s32.f32 %v351
    %v384 = vcvt.s32.f32 %v352
    %v385 = vcvt.s32.f32 %v353
    %v386 = vcvt.s32.f32 %v354
    %v387 = vcvt.s32.f32 %v355
    %v388 = vcvt.s32.f32 %v356
    %v389 = vcvt.s32.f32 %v357
    %v390 = vcvt.s32.f32 %v358
    %v391 = vcvt.s32.f32 %v359
    %v392 = vcvt.s32.f32 %v360
    %v393 = vcvt.s32.f32 %v361
    %v394 = vcvt.s32.f32 %v362
    %v395 = vld [vmem:[%s2] sm:$0xff]
    %v396 = vld [vmem:[%s2 + $0x8] sm:$0xff]
    %v397 = vld [vmem:[%s2 + $0x10] sm:$0xff]
    %v398 = vld [vmem:[%s2 + $0x18] sm:$0xff]
    %v399 = vld [vmem:[%s2 + $0x20] sm:$0xff]
    %v400 = vld [vmem:[%s2 + $0x28] sm:$0xff]
    %v401 = vld [vmem:[%s2 + $0x30] sm:$0xff]
    %v402 = vld [vmem:[%s2 + $0x38] sm:$0xff]
    %v403 = vld [vmem:[%s2 + $0x40] sm:$0xff]
    %v404 = vld [vmem:[%s2 + $0x48] sm:$0xff]
    %v405 = vld [vmem:[%s2 + $0x50] sm:$0xff]
    %v406 = vld [vmem:[%s2 + $0x58] sm:$0xff]
    %v407 = vld [vmem:[%s2 + $0x60] sm:$0xff]
    %v408 = vld [vmem:[%s2 + $0x68] sm:$0xff]
    %v409 = vld [vmem:[%s2 + $0x70] sm:$0xff]
    %v410 = vld [vmem:[%s2 + $0x78] sm:$0xff]
    %v411 = vld [vmem:[%s2 + $0x80] sm:$0xff]
    %v412 = vld [vmem:[%s2 + $0x88] sm:$0xff]
    %v413 = vld [vmem:[%s2 + $0x90] sm:$0xff]
    %v414 = vld [vmem:[%s2 + $0x98] sm:$0xff]
    %v415 = vld [vmem:[%s2 + $0xa0] sm:$0xff]
    %v416 = vld [vmem:[%s2 + $0xa8] sm:$0xff]
    %v417 = vld [vmem:[%s2 + $0xb0] sm:$0xff]
    %v418 = vld [vmem:[%s2 + $0xb8] sm:$0xff]
    %v419 = vld [vmem:[%s2 + $0xc0] sm:$0xff]
    %v420 = vld [vmem:[%s2 + $0xc8] sm:$0xff]
    %v421 = vld [vmem:[%s2 + $0xd0] sm:$0xff]
    %v422 = vld [vmem:[%s2 + $0xd8] sm:$0xff]
    %v423 = vld [vmem:[%s2 + $0xe0] sm:$0xff]
    %v424 = vld [vmem:[%s2 + $0xe8] sm:$0xff]
    %v425 = vld [vmem:[%s2 + $0xf0] sm:$0xff]
    %v426 = vld [vmem:[%s2 + $0xf8] sm:$0xff]
    %428 = vset.pattern.permute.xlu0 0
    %429 = vperm.xlu0 %428, %v395
    %v430 = vpop.permute.xlu0 %429
    %433 = vset.pattern.permute.xlu0 0
    %434 = vperm.xlu0 %433, %v396
    %v435 = vpop.permute.xlu0 %434
    %438 = vset.pattern.permute.xlu0 0
    %439 = vperm.xlu0 %438, %v397
    %v440 = vpop.permute.xlu0 %439
    %443 = vset.pattern.permute.xlu0 0
    %444 = vperm.xlu0 %443, %v398
    %v445 = vpop.permute.xlu0 %444
    %448 = vset.pattern.permute.xlu0 0
    %449 = vperm.xlu0 %448, %v399
    %v450 = vpop.permute.xlu0 %449
    %453 = vset.pattern.permute.xlu0 0
    %454 = vperm.xlu0 %453, %v400
    %v455 = vpop.permute.xlu0 %454
    %458 = vset.pattern.permute.xlu0 0
    %459 = vperm.xlu0 %458, %v401
    %v460 = vpop.permute.xlu0 %459
    %463 = vset.pattern.permute.xlu0 0
    %464 = vperm.xlu0 %463, %v402
    %v465 = vpop.permute.xlu0 %464
    %468 = vset.pattern.permute.xlu0 0
    %469 = vperm.xlu0 %468, %v403
    %v470 = vpop.permute.xlu0 %469
    %473 = vset.pattern.permute.xlu0 0
    %474 = vperm.xlu0 %473, %v404
    %v475 = vpop.permute.xlu0 %474
    %478 = vset.pattern.permute.xlu0 0
    %479 = vperm.xlu0 %478, %v405
    %v480 = vpop.permute.xlu0 %479
    %483 = vset.pattern.permute.xlu0 0
    %484 = vperm.xlu0 %483, %v406
    %v485 = vpop.permute.xlu0 %484
    %488 = vset.pattern.permute.xlu0 0
    %489 = vperm.xlu0 %488, %v407
    %v490 = vpop.permute.xlu0 %489
    %493 = vset.pattern.permute.xlu0 0
    %494 = vperm.xlu0 %493, %v408
    %v495 = vpop.permute.xlu0 %494
    %498 = vset.pattern.permute.xlu0 0
    %499 = vperm.xlu0 %498, %v409
    %v500 = vpop.permute.xlu0 %499
    %503 = vset.pattern.permute.xlu0 0
    %504 = vperm.xlu0 %503, %v410
    %v505 = vpop.permute.xlu0 %504
    %508 = vset.pattern.permute.xlu0 0
    %509 = vperm.xlu0 %508, %v411
    %v510 = vpop.permute.xlu0 %509
    %513 = vset.pattern.permute.xlu0 0
    %514 = vperm.xlu0 %513, %v412
    %v515 = vpop.permute.xlu0 %514
    %518 = vset.pattern.permute.xlu0 0
    %519 = vperm.xlu0 %518, %v413
    %v520 = vpop.permute.xlu0 %519
    %523 = vset.pattern.permute.xlu0 0
    %524 = vperm.xlu0 %523, %v414
    %v525 = vpop.permute.xlu0 %524
    %528 = vset.pattern.permute.xlu0 0
    %529 = vperm.xlu0 %528, %v415
    %v530 = vpop.permute.xlu0 %529
    %533 = vset.pattern.permute.xlu0 0
    %534 = vperm.xlu0 %533, %v416
    %v535 = vpop.permute.xlu0 %534
    %538 = vset.pattern.permute.xlu0 0
    %539 = vperm.xlu0 %538, %v417
    %v540 = vpop.permute.xlu0 %539
    %543 = vset.pattern.permute.xlu0 0
    %544 = vperm.xlu0 %543, %v418
    %v545 = vpop.permute.xlu0 %544
    %548 = vset.pattern.permute.xlu0 0
    %549 = vperm.xlu0 %548, %v419
    %v550 = vpop.permute.xlu0 %549
    %553 = vset.pattern.permute.xlu0 0
    %554 = vperm.xlu0 %553, %v420
    %v555 = vpop.permute.xlu0 %554
    %558 = vset.pattern.permute.xlu0 0
    %559 = vperm.xlu0 %558, %v421
    %v560 = vpop.permute.xlu0 %559
    %563 = vset.pattern.permute.xlu0 0
    %564 = vperm.xlu0 %563, %v422
    %v565 = vpop.permute.xlu0 %564
    %568 = vset.pattern.permute.xlu0 0
    %569 = vperm.xlu0 %568, %v423
    %v570 = vpop.permute.xlu0 %569
    %573 = vset.pattern.permute.xlu0 0
    %574 = vperm.xlu0 %573, %v424
    %v575 = vpop.permute.xlu0 %574
    %578 = vset.pattern.permute.xlu0 0
    %579 = vperm.xlu0 %578, %v425
    %v580 = vpop.permute.xlu0 %579
    %583 = vset.pattern.permute.xlu0 0
    %584 = vperm.xlu0 %583, %v426
    %v585 = vpop.permute.xlu0 %584
    %v587 = vmul.f32 %v363, %v430
    %v588 = vmul.f32 %v364, %v435
    %v589 = vmul.f32 %v365, %v440
    %v590 = vmul.f32 %v366, %v445
    %v591 = vmul.f32 %v367, %v450
    %v592 = vmul.f32 %v368, %v455
    %v593 = vmul.f32 %v369, %v460
    %v594 = vmul.f32 %v370, %v465
    %v595 = vmul.f32 %v371, %v470
    %v596 = vmul.f32 %v372, %v475
    %v597 = vmul.f32 %v373, %v480
    %v598 = vmul.f32 %v374, %v485
    %v599 = vmul.f32 %v375, %v490
    %v600 = vmul.f32 %v376, %v495
    %v601 = vmul.f32 %v377, %v500
    %v602 = vmul.f32 %v378, %v505
    %v603 = vmul.f32 %v379, %v510
    %v604 = vmul.f32 %v380, %v515
    %v605 = vmul.f32 %v381, %v520
    %v606 = vmul.f32 %v382, %v525
    %v607 = vmul.f32 %v383, %v530
    %v608 = vmul.f32 %v384, %v535
    %v609 = vmul.f32 %v385, %v540
    %v610 = vmul.f32 %v386, %v545
    %v611 = vmul.f32 %v387, %v550
    %v612 = vmul.f32 %v388, %v555
    %v613 = vmul.f32 %v389, %v560
    %v614 = vmul.f32 %v390, %v565
    %v615 = vmul.f32 %v391, %v570
    %v616 = vmul.f32 %v392, %v575
    %v617 = vmul.f32 %v393, %v580
    %v618 = vmul.f32 %v394, %v585
    %v619 = vpack.c.bf16 %v588, %v587
    %v620 = vpack.c.bf16 %v590, %v589
    %v621 = vpack.c.bf16 %v592, %v591
    %v622 = vpack.c.bf16 %v594, %v593
    %v623 = vpack.c.bf16 %v596, %v595
    %v624 = vpack.c.bf16 %v598, %v597
    %v625 = vpack.c.bf16 %v600, %v599
    %v626 = vpack.c.bf16 %v602, %v601
    %v627 = vpack.c.bf16 %v604, %v603
    %v628 = vpack.c.bf16 %v606, %v605
    %v629 = vpack.c.bf16 %v608, %v607
    %v630 = vpack.c.bf16 %v610, %v609
    %v631 = vpack.c.bf16 %v612, %v611
    %v632 = vpack.c.bf16 %v614, %v613
    %v633 = vpack.c.bf16 %v616, %v615
    %v634 = vpack.c.bf16 %v618, %v617
    %635 = vmatprep.subr.bf16.mxu0 0
    %636 = vmatpush1.bf16.msra.mxu0 %v626
    %637 = vmatprep.subr.bf16.mxu0 0
    %638 = vmatpush1.bf16.msra.mxu0 %v625
    %639 = vmatprep.subr.bf16.mxu0 0
    %640 = vmatpush1.bf16.msra.mxu0 %v624
    %641 = vmatprep.subr.bf16.mxu0 0
    %642 = vmatpush1.bf16.msra.mxu0 %v623
    %643 = vmatprep.subr.bf16.mxu0 0
    %644 = vmatpush1.bf16.msra.mxu0 %v622
    %645 = vmatprep.subr.bf16.mxu0 0
    %646 = vmatpush1.bf16.msra.mxu0 %v621
    %647 = vmatprep.subr.bf16.mxu0 0
    %648 = vmatpush1.bf16.msra.mxu0 %v620
    %649 = vmatprep.subr.bf16.mxu0 0
    %650 = vmatpush1.bf16.msra.mxu0 %v619
    %651 = vmatprep.subr.bf16.mxu0 0
    %652 = vmatpush2.bf16.msra.mxu0 %v634
    %653 = vmatprep.subr.bf16.mxu0 0
    %654 = vmatpush2.bf16.msra.mxu0 %v633
    %655 = vmatprep.subr.bf16.mxu0 0
    %656 = vmatpush2.bf16.msra.mxu0 %v632
    %657 = vmatprep.subr.bf16.mxu0 0
    %658 = vmatpush2.bf16.msra.mxu0 %v631
    %659 = vmatprep.subr.bf16.mxu0 0
    %660 = vmatpush2.bf16.msra.mxu0 %v630
    %661 = vmatprep.subr.bf16.mxu0 0
    %662 = vmatpush2.bf16.msra.mxu0 %v629
    %663 = vmatprep.subr.bf16.mxu0 0
    %664 = vmatpush2.bf16.msra.mxu0 %v628
    %665 = vmatprep.subr.bf16.mxu0 0
    %666 = vmatpush2.bf16.msra.mxu0 %v627
    %667 = vmatprep.mubr.bf16.mxu0 %v154
    %668 = vmatmul.mubr.bf16.gmra.mxu0 %v153
    %v669 = vpop.f32.mrf.mxu0
    %v670 = vadd.f32 0.0, %v669
    %v671 = vpop.f32.mrf.mxu0
    %v672 = vpop.f32.mrf.mxu0
    %v673 = vadd.f32 0.0, %v672
    %v674 = vpop.f32.mrf.mxu0
    %675 = vmatprep.mubr.bf16.mxu0 %v156
    %676 = vmatmul.mubr.bf16.gmra.mxu0 %v155
    %v677 = vpop.f32.mrf.mxu0
    %v678 = vadd.f32 0.0, %v677
    %v679 = vpop.f32.mrf.mxu0
    %v680 = vpop.f32.mrf.mxu0
    %v681 = vadd.f32 0.0, %v680
    %v682 = vpop.f32.mrf.mxu0
    %683 = vmatprep.mubr.bf16.mxu0 %v158
    %684 = vmatmul.mubr.bf16.gmra.mxu0 %v157
    %v685 = vpop.f32.mrf.mxu0
    %v686 = vadd.f32 0.0, %v685
    %v687 = vpop.f32.mrf.mxu0
    %v688 = vpop.f32.mrf.mxu0
    %v689 = vadd.f32 0.0, %v688
    %v690 = vpop.f32.mrf.mxu0
    %691 = vmatprep.mubr.bf16.mxu0 %v160
    %692 = vmatmul.mubr.bf16.gmra.mxu0 %v159
    %v693 = vpop.f32.mrf.mxu0
    %v694 = vadd.f32 0.0, %v693
    %v695 = vpop.f32.mrf.mxu0
    %v696 = vpop.f32.mrf.mxu0
    %v697 = vadd.f32 0.0, %v696
    %v698 = vpop.f32.mrf.mxu0
    %699 = vmatprep.mubr.bf16.mxu0 %v162
    %700 = vmatmul.mubr.bf16.gmra.mxu0 %v161
    %v701 = vpop.f32.mrf.mxu0
    %v702 = vadd.f32 0.0, %v701
    %v703 = vpop.f32.mrf.mxu0
    %v704 = vpop.f32.mrf.mxu0
    %v705 = vadd.f32 0.0, %v704
    %v706 = vpop.f32.mrf.mxu0
    %707 = vmatprep.mubr.bf16.mxu0 %v164
    %708 = vmatmul.mubr.bf16.gmra.mxu0 %v163
    %v709 = vpop.f32.mrf.mxu0
    %v710 = vadd.f32 0.0, %v709
    %v711 = vpop.f32.mrf.mxu0
    %v712 = vpop.f32.mrf.mxu0
    %v713 = vadd.f32 0.0, %v712
    %v714 = vpop.f32.mrf.mxu0
    %715 = vmatprep.mubr.bf16.mxu0 %v166
    %716 = vmatmul.mubr.bf16.gmra.mxu0 %v165
    %v717 = vpop.f32.mrf.mxu0
    %v718 = vadd.f32 0.0, %v717
    %v719 = vpop.f32.mrf.mxu0
    %v720 = vpop.f32.mrf.mxu0
    %v721 = vadd.f32 0.0, %v720
    %v722 = vpop.f32.mrf.mxu0
    %723 = vmatprep.mubr.bf16.mxu0 %v168
    %724 = vmatmul.mubr.bf16.gmra.mxu0 %v167
    %v725 = vpop.f32.mrf.mxu0
    %v726 = vadd.f32 0.0, %v725
    %v727 = vpop.f32.mrf.mxu0
    %v728 = vpop.f32.mrf.mxu0
    %v729 = vadd.f32 0.0, %v728
    %v730 = vpop.f32.mrf.mxu0
    %731 = vdwg.mxu0
    %v732 = vadd.f32 %v587, %v588
    %v733 = vadd.f32 %v732, %v589
    %v734 = vadd.f32 %v733, %v590
    %v735 = vadd.f32 %v734, %v591
    %v736 = vadd.f32 %v735, %v592
    %v737 = vadd.f32 %v736, %v593
    %v738 = vadd.f32 %v737, %v594
    %v739 = vadd.f32 %v738, %v595
    %v740 = vadd.f32 %v739, %v596
    %v741 = vadd.f32 %v740, %v597
    %v742 = vadd.f32 %v741, %v598
    %v743 = vadd.f32 %v742, %v599
    %v744 = vadd.f32 %v743, %v600
    %v745 = vadd.f32 %v744, %v601
    %v746 = vadd.f32 %v745, %v602
    %v747 = vadd.f32 %v746, %v603
    %v748 = vadd.f32 %v747, %v604
    %v749 = vadd.f32 %v748, %v605
    %v750 = vadd.f32 %v749, %v606
    %v751 = vadd.f32 %v750, %v607
    %v752 = vadd.f32 %v751, %v608
    %v753 = vadd.f32 %v752, %v609
    %v754 = vadd.f32 %v753, %v610
    %v755 = vadd.f32 %v754, %v611
    %v756 = vadd.f32 %v755, %v612
    %v757 = vadd.f32 %v756, %v613
    %v758 = vadd.f32 %v757, %v614
    %v759 = vadd.f32 %v758, %v615
    %v760 = vadd.f32 %v759, %v616
    %v761 = vadd.f32 %v760, %v617
    %v762 = vadd.f32 %v761, %v618
    %v763 = vrot.slane %v762, 4
    %v764 = vadd.f32 %v762, %v763
    %v765 = vrot.slane %v764, 2
    %v766 = vadd.f32 %v764, %v765
    %v767 = vrot.slane %v766, 1
    %v768 = vadd.f32 %v766, %v767
    %vm769 = vcmp.gt.f32.partialorder %v768, 0.0
    %v770 = vrsqrt.pop %v768
    %v771 = vsel %vm769, %v770, 0.0
    %772 = vxpose.xlu0.b32.start [1/16] %v771, 128
    %773 = vxpose.xlu0.b32.cont [2/16] 0.0, 128
    %774 = vxpose.xlu0.b32.cont [3/16] 0.0, 128
    %775 = vxpose.xlu0.b32.cont [4/16] 0.0, 128
    %776 = vxpose.xlu0.b32.cont [5/16] 0.0, 128
    %777 = vxpose.xlu0.b32.cont [6/16] 0.0, 128
    %778 = vxpose.xlu0.b32.cont [7/16] 0.0, 128
    %779 = vxpose.xlu0.b32.cont [8/16] 0.0, 128
    %780 = vxpose.xlu0.b32.cont [9/16] 0.0, 128
    %781 = vxpose.xlu0.b32.cont [10/16] 0.0, 128
    %782 = vxpose.xlu0.b32.cont [11/16] 0.0, 128
    %783 = vxpose.xlu0.b32.cont [12/16] 0.0, 128
    %784 = vxpose.xlu0.b32.cont [13/16] 0.0, 128
    %785 = vxpose.xlu0.b32.cont [14/16] 0.0, 128
    %786 = vxpose.xlu0.b32.cont [15/16] 0.0, 128
    %787 = vxpose.xlu0.b32.end [16/16] 0.0, 128
    %v788 = vpop.trf.xlu0
    %v789 = vpop.trf.xlu0
    %v790 = vpop.trf.xlu0
    %v791 = vpop.trf.xlu0
    %v792 = vpop.trf.xlu0
    %v793 = vpop.trf.xlu0
    %v794 = vpop.trf.xlu0
    %v795 = vpop.trf.xlu0
    %v796 = vpop.trf.xlu0
    %v797 = vpop.trf.xlu0
    %v798 = vpop.trf.xlu0
    %v799 = vpop.trf.xlu0
    %v800 = vpop.trf.xlu0
    %v801 = vpop.trf.xlu0
    %v802 = vpop.trf.xlu0
    %v803 = vpop.trf.xlu0
    %805 = vset.pattern.permute.xlu0 0
    %806 = vperm.xlu0 %805, %v788
    %v807 = vpop.permute.xlu0 %806
    %810 = vset.pattern.permute.xlu0 0
    %811 = vperm.xlu0 %810, %v789
    %v812 = vpop.permute.xlu0 %811
    %815 = vset.pattern.permute.xlu0 0
    %816 = vperm.xlu0 %815, %v790
    %v817 = vpop.permute.xlu0 %816
    %820 = vset.pattern.permute.xlu0 0
    %821 = vperm.xlu0 %820, %v791
    %v822 = vpop.permute.xlu0 %821
    %825 = vset.pattern.permute.xlu0 0
    %826 = vperm.xlu0 %825, %v792
    %v827 = vpop.permute.xlu0 %826
    %830 = vset.pattern.permute.xlu0 0
    %831 = vperm.xlu0 %830, %v793
    %v832 = vpop.permute.xlu0 %831
    %835 = vset.pattern.permute.xlu0 0
    %836 = vperm.xlu0 %835, %v794
    %v837 = vpop.permute.xlu0 %836
    %840 = vset.pattern.permute.xlu0 0
    %841 = vperm.xlu0 %840, %v795
    %v842 = vpop.permute.xlu0 %841
    %845 = vset.pattern.permute.xlu0 0
    %846 = vperm.xlu0 %845, %v796
    %v847 = vpop.permute.xlu0 %846
    %850 = vset.pattern.permute.xlu0 0
    %851 = vperm.xlu0 %850, %v797
    %v852 = vpop.permute.xlu0 %851
    %855 = vset.pattern.permute.xlu0 0
    %856 = vperm.xlu0 %855, %v798
    %v857 = vpop.permute.xlu0 %856
    %860 = vset.pattern.permute.xlu0 0
    %861 = vperm.xlu0 %860, %v799
    %v862 = vpop.permute.xlu0 %861
    %865 = vset.pattern.permute.xlu0 0
    %866 = vperm.xlu0 %865, %v800
    %v867 = vpop.permute.xlu0 %866
    %870 = vset.pattern.permute.xlu0 0
    %871 = vperm.xlu0 %870, %v801
    %v872 = vpop.permute.xlu0 %871
    %875 = vset.pattern.permute.xlu0 0
    %876 = vperm.xlu0 %875, %v802
    %v877 = vpop.permute.xlu0 %876
    %880 = vset.pattern.permute.xlu0 0
    %881 = vperm.xlu0 %880, %v803
    %v882 = vpop.permute.xlu0 %881
    %v884 = vmul.f32 %v807, %v670
    %v885 = vmul.f32 %v812, %v673
    %v886 = vmul.f32 %v817, %v678
    %v887 = vmul.f32 %v822, %v681
    %v888 = vmul.f32 %v827, %v686
    %v889 = vmul.f32 %v832, %v689
    %v890 = vmul.f32 %v837, %v694
    %v891 = vmul.f32 %v842, %v697
    %v892 = vmul.f32 %v847, %v702
    %v893 = vmul.f32 %v852, %v705
    %v894 = vmul.f32 %v857, %v710
    %v895 = vmul.f32 %v862, %v713
    %v896 = vmul.f32 %v867, %v718
    %v897 = vmul.f32 %v872, %v721
    %v898 = vmul.f32 %v877, %v726
    %v899 = vmul.f32 %v882, %v729
    %v900 = vmul.f32 %v884, %v771
    %v901 = vmul.f32 %v885, %v771
    %v902 = vmul.f32 %v886, %v771
    %v903 = vmul.f32 %v887, %v771
    %v904 = vmul.f32 %v888, %v771
    %v905 = vmul.f32 %v889, %v771
    %v906 = vmul.f32 %v890, %v771
    %v907 = vmul.f32 %v891, %v771
    %v908 = vmul.f32 %v892, %v771
    %v909 = vmul.f32 %v893, %v771
    %v910 = vmul.f32 %v894, %v771
    %v911 = vmul.f32 %v895, %v771
    %v912 = vmul.f32 %v896, %v771
    %v913 = vmul.f32 %v897, %v771
    %v914 = vmul.f32 %v898, %v771
    %v915 = vmul.f32 %v899, %v771
    %v916 = vpack.c.bf16 %v901, %v900
    %v917 = vpack.c.bf16 %v903, %v902
    %v918 = vpack.c.bf16 %v905, %v904
    %v919 = vpack.c.bf16 %v907, %v906
    %v920 = vpack.c.bf16 %v909, %v908
    %v921 = vpack.c.bf16 %v911, %v910
    %v922 = vpack.c.bf16 %v913, %v912
    %v923 = vpack.c.bf16 %v915, %v914
    %v924 = vld [vmem:[%s3] sm:$0xf]
    %v925 = vld [vmem:[%s3 + $0x4] sm:$0xf]
    %v926 = vld [vmem:[%s3 + $0x8] sm:$0xf]
    %v927 = vld [vmem:[%s3 + $0xc] sm:$0xf]
    %v928 = vld [vmem:[%s3 + $0x10] sm:$0xf]
    %v929 = vld [vmem:[%s3 + $0x14] sm:$0xf]
    %v930 = vld [vmem:[%s3 + $0x18] sm:$0xf]
    %v931 = vld [vmem:[%s3 + $0x1c] sm:$0xf]
    %v932 = vld [vmem:[%s3 + $0x20] sm:$0xf]
    %v933 = vld [vmem:[%s3 + $0x24] sm:$0xf]
    %v934 = vld [vmem:[%s3 + $0x28] sm:$0xf]
    %v935 = vld [vmem:[%s3 + $0x2c] sm:$0xf]
    %v936 = vld [vmem:[%s3 + $0x30] sm:$0xf]
    %v937 = vld [vmem:[%s3 + $0x34] sm:$0xf]
    %v938 = vld [vmem:[%s3 + $0x38] sm:$0xf]
    %v939 = vld [vmem:[%s3 + $0x3c] sm:$0xf]
    %v940 = vld [vmem:[%s4] sm:$0xf]
    %v941 = vld [vmem:[%s4 + $0x4] sm:$0xf]
    %v942 = vld [vmem:[%s4 + $0x8] sm:$0xf]
    %v943 = vld [vmem:[%s4 + $0xc] sm:$0xf]
    %v944 = vld [vmem:[%s4 + $0x10] sm:$0xf]
    %v945 = vld [vmem:[%s4 + $0x14] sm:$0xf]
    %v946 = vld [vmem:[%s4 + $0x18] sm:$0xf]
    %v947 = vld [vmem:[%s4 + $0x1c] sm:$0xf]
    %v948 = vld [vmem:[%s4 + $0x20] sm:$0xf]
    %v949 = vld [vmem:[%s4 + $0x24] sm:$0xf]
    %v950 = vld [vmem:[%s4 + $0x28] sm:$0xf]
    %v951 = vld [vmem:[%s4 + $0x2c] sm:$0xf]
    %v952 = vld [vmem:[%s4 + $0x30] sm:$0xf]
    %v953 = vld [vmem:[%s4 + $0x34] sm:$0xf]
    %v954 = vld [vmem:[%s4 + $0x38] sm:$0xf]
    %v955 = vld [vmem:[%s4 + $0x3c] sm:$0xf]
    %v956 = vld [vmem:[%s5] sm:$0x1]
    %v958 = vlaneseq
    %v959 = vshrl.u32 %v958, 7
    %v960 = vsub.s32 0, %v959
    %v961 = vrot.slane %v956, %v960
    %v979 = vunpack.c.l.b16 %v924
    %v980 = vunpack.c.l.b16 %v925
    %v981 = vunpack.c.l.b16 %v926
    %v982 = vunpack.c.l.b16 %v927
    %v983 = vunpack.c.l.b16 %v928
    %v984 = vunpack.c.l.b16 %v929
    %v985 = vunpack.c.l.b16 %v930
    %v986 = vunpack.c.l.b16 %v931
    %v987 = vunpack.c.l.b16 %v932
    %v988 = vunpack.c.l.b16 %v933
    %v989 = vunpack.c.l.b16 %v934
    %v990 = vunpack.c.l.b16 %v935
    %v991 = vunpack.c.l.b16 %v936
    %v992 = vunpack.c.l.b16 %v937
    %v993 = vunpack.c.l.b16 %v938
    %v994 = vunpack.c.l.b16 %v939
    %v995 = vpack.c.b16 %v980, %v979
    %v996 = vpack.c.b16 %v982, %v981
    %v997 = vpack.c.b16 %v984, %v983
    %v998 = vpack.c.b16 %v986, %v985
    %v999 = vpack.c.b16 %v988, %v987
    %v1000 = vpack.c.b16 %v990, %v989
    %v1001 = vpack.c.b16 %v992, %v991
    %v1002 = vpack.c.b16 %v994, %v993
    %v1027 = vunpack.c.l.b16 %v940
    %v1028 = vunpack.c.l.b16 %v941
    %v1029 = vunpack.c.l.b16 %v942
    %v1030 = vunpack.c.l.b16 %v943
    %v1031 = vunpack.c.l.b16 %v944
    %v1032 = vunpack.c.l.b16 %v945
    %v1033 = vunpack.c.l.b16 %v946
    %v1034 = vunpack.c.l.b16 %v947
    %v1035 = vunpack.c.l.b16 %v948
    %v1036 = vunpack.c.l.b16 %v949
    %v1037 = vunpack.c.l.b16 %v950
    %v1038 = vunpack.c.l.b16 %v951
    %v1039 = vunpack.c.l.b16 %v952
    %v1040 = vunpack.c.l.b16 %v953
    %v1041 = vunpack.c.l.b16 %v954
    %v1042 = vunpack.c.l.b16 %v955
    %v1043 = vpack.c.b16 %v1028, %v1027
    %v1044 = vpack.c.b16 %v1030, %v1029
    %v1045 = vpack.c.b16 %v1032, %v1031
    %v1046 = vpack.c.b16 %v1034, %v1033
    %v1047 = vpack.c.b16 %v1036, %v1035
    %v1048 = vpack.c.b16 %v1038, %v1037
    %v1049 = vpack.c.b16 %v1040, %v1039
    %v1050 = vpack.c.b16 %v1042, %v1041
    %1059 = vmatprep.subr.bf16.mxu0 0
    %1060 = vmatpush1.bf16.msra.mxu0 %v1050
    %1061 = vmatprep.subr.bf16.mxu0 0
    %1062 = vmatpush1.bf16.msra.mxu0 %v1049
    %1063 = vmatprep.subr.bf16.mxu0 0
    %1064 = vmatpush1.bf16.msra.mxu0 %v1048
    %1065 = vmatprep.subr.bf16.mxu0 0
    %1066 = vmatpush1.bf16.msra.mxu0 %v1047
    %1067 = vmatprep.subr.bf16.mxu0 0
    %1068 = vmatpush1.bf16.msra.mxu0 %v1046
    %1069 = vmatprep.subr.bf16.mxu0 0
    %1070 = vmatpush1.bf16.msra.mxu0 %v1045
    %1071 = vmatprep.subr.bf16.mxu0 0
    %1072 = vmatpush1.bf16.msra.mxu0 %v1044
    %1073 = vmatprep.subr.bf16.mxu0 0
    %1074 = vmatpush1.bf16.msra.mxu0 %v1043
    %1075 = vmatprep.subr.bf16.mxu0 0
    %1076 = vmatpush2.bf16.msra.mxu0 0
    %1077 = vmatprep.subr.bf16.mxu0 0
    %1078 = vmatpush2.bf16.msra.mxu0 0
    %1079 = vmatprep.subr.bf16.mxu0 0
    %1080 = vmatpush2.bf16.msra.mxu0 0
    %1081 = vmatprep.subr.bf16.mxu0 0
    %1082 = vmatpush2.bf16.msra.mxu0 0
    %1083 = vmatprep.subr.bf16.mxu0 0
    %1084 = vmatpush2.bf16.msra.mxu0 0
    %1085 = vmatprep.subr.bf16.mxu0 0
    %1086 = vmatpush2.bf16.msra.mxu0 0
    %1087 = vmatprep.subr.bf16.mxu0 0
    %1088 = vmatpush2.bf16.msra.mxu0 0
    %1089 = vmatprep.subr.bf16.mxu0 0
    %1090 = vmatpush2.bf16.msra.mxu0 0
    %1091 = vmatprep.mubr.bf16.mxu0 0
    %1092 = vmatmul.mubr.bf16.gmra.mxu0 %v995
    %v1093 = vpop.f32.mrf.mxu0
    %v1094 = vadd.f32 %v961, %v1093
    %v1095 = vpop.f32.mrf.mxu0
    %v1096 = vpop.f32.mrf.mxu0
    %v1097 = vadd.f32 %v961, %v1096
    %v1098 = vpop.f32.mrf.mxu0
    %1099 = vmatprep.mubr.bf16.mxu0 0
    %1100 = vmatmul.mubr.bf16.gmra.mxu0 %v996
    %v1101 = vpop.f32.mrf.mxu0
    %v1102 = vadd.f32 %v961, %v1101
    %v1103 = vpop.f32.mrf.mxu0
    %v1104 = vpop.f32.mrf.mxu0
    %v1105 = vadd.f32 %v961, %v1104
    %v1106 = vpop.f32.mrf.mxu0
    %1107 = vmatprep.mubr.bf16.mxu0 0
    %1108 = vmatmul.mubr.bf16.gmra.mxu0 %v997
    %v1109 = vpop.f32.mrf.mxu0
    %v1110 = vadd.f32 %v961, %v1109
    %v1111 = vpop.f32.mrf.mxu0
    %v1112 = vpop.f32.mrf.mxu0
    %v1113 = vadd.f32 %v961, %v1112
    %v1114 = vpop.f32.mrf.mxu0
    %1115 = vmatprep.mubr.bf16.mxu0 0
    %1116 = vmatmul.mubr.bf16.gmra.mxu0 %v998
    %v1117 = vpop.f32.mrf.mxu0
    %v1118 = vadd.f32 %v961, %v1117
    %v1119 = vpop.f32.mrf.mxu0
    %v1120 = vpop.f32.mrf.mxu0
    %v1121 = vadd.f32 %v961, %v1120
    %v1122 = vpop.f32.mrf.mxu0
    %1123 = vmatprep.mubr.bf16.mxu0 0
    %1124 = vmatmul.mubr.bf16.gmra.mxu0 %v999
    %v1125 = vpop.f32.mrf.mxu0
    %v1126 = vadd.f32 %v961, %v1125
    %v1127 = vpop.f32.mrf.mxu0
    %v1128 = vpop.f32.mrf.mxu0
    %v1129 = vadd.f32 %v961, %v1128
    %v1130 = vpop.f32.mrf.mxu0
    %1131 = vmatprep.mubr.bf16.mxu0 0
    %1132 = vmatmul.mubr.bf16.gmra.mxu0 %v1000
    %v1133 = vpop.f32.mrf.mxu0
    %v1134 = vadd.f32 %v961, %v1133
    %v1135 = vpop.f32.mrf.mxu0
    %v1136 = vpop.f32.mrf.mxu0
    %v1137 = vadd.f32 %v961, %v1136
    %v1138 = vpop.f32.mrf.mxu0
    %1139 = vmatprep.mubr.bf16.mxu0 0
    %1140 = vmatmul.mubr.bf16.gmra.mxu0 %v1001
    %v1141 = vpop.f32.mrf.mxu0
    %v1142 = vadd.f32 %v961, %v1141
    %v1143 = vpop.f32.mrf.mxu0
    %v1144 = vpop.f32.mrf.mxu0
    %v1145 = vadd.f32 %v961, %v1144
    %v1146 = vpop.f32.mrf.mxu0
    %1147 = vmatprep.mubr.bf16.mxu0 0
    %1148 = vmatmul.mubr.bf16.gmra.mxu0 %v1002
    %v1149 = vpop.f32.mrf.mxu0
    %v1150 = vadd.f32 %v961, %v1149
    %v1151 = vpop.f32.mrf.mxu0
    %v1152 = vpop.f32.mrf.mxu0
    %v1153 = vadd.f32 %v961, %v1152
    %v1154 = vpop.f32.mrf.mxu0
    %1155 = vdwg.mxu0
    %v1156 = vpack.c.bf16 %v1097, %v1094
    %v1157 = vpack.c.bf16 %v1105, %v1102
    %v1158 = vpack.c.bf16 %v1113, %v1110
    %v1159 = vpack.c.bf16 %v1121, %v1118
    %v1160 = vpack.c.bf16 %v1129, %v1126
    %v1161 = vpack.c.bf16 %v1137, %v1134
    %v1162 = vpack.c.bf16 %v1145, %v1142
    %v1163 = vpack.c.bf16 %v1153, %v1150
    %1164 = vmatprep.subr.bf16.mxu0 0
    %1165 = vmatpush1.bf16.msra.mxu0 %v1163
    %1166 = vmatprep.subr.bf16.mxu0 0
    %1167 = vmatpush1.bf16.msra.mxu0 %v1162
    %1168 = vmatprep.subr.bf16.mxu0 0
    %1169 = vmatpush1.bf16.msra.mxu0 %v1161
    %1170 = vmatprep.subr.bf16.mxu0 0
    %1171 = vmatpush1.bf16.msra.mxu0 %v1160
    %1172 = vmatprep.subr.bf16.mxu0 0
    %1173 = vmatpush1.bf16.msra.mxu0 %v1159
    %1174 = vmatprep.subr.bf16.mxu0 0
    %1175 = vmatpush1.bf16.msra.mxu0 %v1158
    %1176 = vmatprep.subr.bf16.mxu0 0
    %1177 = vmatpush1.bf16.msra.mxu0 %v1157
    %1178 = vmatprep.subr.bf16.mxu0 0
    %1179 = vmatpush1.bf16.msra.mxu0 %v1156
    %1180 = vmatprep.subr.bf16.mxu0 0
    %1181 = vmatpush2.bf16.msra.mxu0 0
    %1182 = vmatprep.subr.bf16.mxu0 0
    %1183 = vmatpush2.bf16.msra.mxu0 0
    %1184 = vmatprep.subr.bf16.mxu0 0
    %1185 = vmatpush2.bf16.msra.mxu0 0
    %1186 = vmatprep.subr.bf16.mxu0 0
    %1187 = vmatpush2.bf16.msra.mxu0 0
    %1188 = vmatprep.subr.bf16.mxu0 0
    %1189 = vmatpush2.bf16.msra.mxu0 0
    %1190 = vmatprep.subr.bf16.mxu0 0
    %1191 = vmatpush2.bf16.msra.mxu0 0
    %1192 = vmatprep.subr.bf16.mxu0 0
    %1193 = vmatpush2.bf16.msra.mxu0 0
    %1194 = vmatprep.subr.bf16.mxu0 0
    %1195 = vmatpush2.bf16.msra.mxu0 0
    %1196 = vmatprep.mubr.bf16.mxu0 0
    %1197 = vmatmul.mubr.bf16.gmra.mxu0 %v916
    %v1198 = vpop.f32.mrf.mxu0
    %v1199 = vadd.f32 0.0, %v1198
    %v1200 = vpop.f32.mrf.mxu0
    %v1201 = vpop.f32.mrf.mxu0
    %v1202 = vadd.f32 0.0, %v1201
    %v1203 = vpop.f32.mrf.mxu0
    %1204 = vmatprep.mubr.bf16.mxu0 0
    %1205 = vmatmul.mubr.bf16.gmra.mxu0 %v917
    %v1206 = vpop.f32.mrf.mxu0
    %v1207 = vadd.f32 0.0, %v1206
    %v1208 = vpop.f32.mrf.mxu0
    %v1209 = vpop.f32.mrf.mxu0
    %v1210 = vadd.f32 0.0, %v1209
    %v1211 = vpop.f32.mrf.mxu0
    %1212 = vmatprep.mubr.bf16.mxu0 0
    %1213 = vmatmul.mubr.bf16.gmra.mxu0 %v918
    %v1214 = vpop.f32.mrf.mxu0
    %v1215 = vadd.f32 0.0, %v1214
    %v1216 = vpop.f32.mrf.mxu0
    %v1217 = vpop.f32.mrf.mxu0
    %v1218 = vadd.f32 0.0, %v1217
    %v1219 = vpop.f32.mrf.mxu0
    %1220 = vmatprep.mubr.bf16.mxu0 0
    %1221 = vmatmul.mubr.bf16.gmra.mxu0 %v919
    %v1222 = vpop.f32.mrf.mxu0
    %v1223 = vadd.f32 0.0, %v1222
    %v1224 = vpop.f32.mrf.mxu0
    %v1225 = vpop.f32.mrf.mxu0
    %v1226 = vadd.f32 0.0, %v1225
    %v1227 = vpop.f32.mrf.mxu0
    %1228 = vmatprep.mubr.bf16.mxu0 0
    %1229 = vmatmul.mubr.bf16.gmra.mxu0 %v920
    %v1230 = vpop.f32.mrf.mxu0
    %v1231 = vadd.f32 0.0, %v1230
    %v1232 = vpop.f32.mrf.mxu0
    %v1233 = vpop.f32.mrf.mxu0
    %v1234 = vadd.f32 0.0, %v1233
    %v1235 = vpop.f32.mrf.mxu0
    %1236 = vmatprep.mubr.bf16.mxu0 0
    %1237 = vmatmul.mubr.bf16.gmra.mxu0 %v921
    %v1238 = vpop.f32.mrf.mxu0
    %v1239 = vadd.f32 0.0, %v1238
    %v1240 = vpop.f32.mrf.mxu0
    %v1241 = vpop.f32.mrf.mxu0
    %v1242 = vadd.f32 0.0, %v1241
    %v1243 = vpop.f32.mrf.mxu0
    %1244 = vmatprep.mubr.bf16.mxu0 0
    %1245 = vmatmul.mubr.bf16.gmra.mxu0 %v922
    %v1246 = vpop.f32.mrf.mxu0
    %v1247 = vadd.f32 0.0, %v1246
    %v1248 = vpop.f32.mrf.mxu0
    %v1249 = vpop.f32.mrf.mxu0
    %v1250 = vadd.f32 0.0, %v1249
    %v1251 = vpop.f32.mrf.mxu0
    %1252 = vmatprep.mubr.bf16.mxu0 0
    %1253 = vmatmul.mubr.bf16.gmra.mxu0 %v923
    %v1254 = vpop.f32.mrf.mxu0
    %v1255 = vadd.f32 0.0, %v1254
    %v1256 = vpop.f32.mrf.mxu0
    %v1257 = vpop.f32.mrf.mxu0
    %v1258 = vadd.f32 0.0, %v1257
    %v1259 = vpop.f32.mrf.mxu0
    %1260 = vdwg.mxu0
    %v1261 = vmax.f32 %v1199, 0.0
    %v1262 = vmax.f32 %v1202, 0.0
    %v1263 = vmax.f32 %v1207, 0.0
    %v1264 = vmax.f32 %v1210, 0.0
    %v1265 = vmax.f32 %v1215, 0.0
    %v1266 = vmax.f32 %v1218, 0.0
    %v1267 = vmax.f32 %v1223, 0.0
    %v1268 = vmax.f32 %v1226, 0.0
    %v1269 = vmax.f32 %v1231, 0.0
    %v1270 = vmax.f32 %v1234, 0.0
    %v1271 = vmax.f32 %v1239, 0.0
    %v1272 = vmax.f32 %v1242, 0.0
    %v1273 = vmax.f32 %v1247, 0.0
    %v1274 = vmax.f32 %v1250, 0.0
    %v1275 = vmax.f32 %v1255, 0.0
    %v1276 = vmax.f32 %v1258, 0.0
    %v1277 = vpack.c.bf16 %v1262, %v1261
    %v1278 = vpack.c.bf16 %v1264, %v1263
    %v1279 = vpack.c.bf16 %v1266, %v1265
    %v1280 = vpack.c.bf16 %v1268, %v1267
    %v1281 = vpack.c.bf16 %v1270, %v1269
    %v1282 = vpack.c.bf16 %v1272, %v1271
    %v1283 = vpack.c.bf16 %v1274, %v1273
    %v1284 = vpack.c.bf16 %v1276, %v1275
    %v1285 = vld [vmem:[%s6] sm:$0xf]
    %v1286 = vld [vmem:[%s6 + $0x4] sm:$0xf]
    %v1287 = vld [vmem:[%s6 + $0x8] sm:$0xf]
    %v1288 = vld [vmem:[%s6 + $0xc] sm:$0xf]
    %v1289 = vld [vmem:[%s6 + $0x10] sm:$0xf]
    %v1290 = vld [vmem:[%s6 + $0x14] sm:$0xf]
    %v1291 = vld [vmem:[%s6 + $0x18] sm:$0xf]
    %v1292 = vld [vmem:[%s6 + $0x1c] sm:$0xf]
    %v1293 = vld [vmem:[%s6 + $0x20] sm:$0xf]
    %v1294 = vld [vmem:[%s6 + $0x24] sm:$0xf]
    %v1295 = vld [vmem:[%s6 + $0x28] sm:$0xf]
    %v1296 = vld [vmem:[%s6 + $0x2c] sm:$0xf]
    %v1297 = vld [vmem:[%s6 + $0x30] sm:$0xf]
    %v1298 = vld [vmem:[%s6 + $0x34] sm:$0xf]
    %v1299 = vld [vmem:[%s6 + $0x38] sm:$0xf]
    %v1300 = vld [vmem:[%s6 + $0x3c] sm:$0xf]
    %v1301 = vld [vmem:[%s7] sm:$0x1]
    %v1303 = vlaneseq
    %v1304 = vshrl.u32 %v1303, 7
    %v1305 = vsub.s32 0, %v1304
    %v1306 = vrot.slane %v1301, %v1305
    %v1324 = vunpack.c.l.b16 %v1285
    %v1325 = vunpack.c.l.b16 %v1286
    %v1326 = vunpack.c.l.b16 %v1287
    %v1327 = vunpack.c.l.b16 %v1288
    %v1328 = vunpack.c.l.b16 %v1289
    %v1329 = vunpack.c.l.b16 %v1290
    %v1330 = vunpack.c.l.b16 %v1291
    %v1331 = vunpack.c.l.b16 %v1292
    %v1332 = vunpack.c.l.b16 %v1293
    %v1333 = vunpack.c.l.b16 %v1294
    %v1334 = vunpack.c.l.b16 %v1295
    %v1335 = vunpack.c.l.b16 %v1296
    %v1336 = vunpack.c.l.b16 %v1297
    %v1337 = vunpack.c.l.b16 %v1298
    %v1338 = vunpack.c.l.b16 %v1299
    %v1339 = vunpack.c.l.b16 %v1300
    %v1340 = vpack.c.b16 %v1325, %v1324
    %v1341 = vpack.c.b16 %v1327, %v1326
    %v1342 = vpack.c.b16 %v1329, %v1328
    %v1343 = vpack.c.b16 %v1331, %v1330
    %v1344 = vpack.c.b16 %v1333, %v1332
    %v1345 = vpack.c.b16 %v1335, %v1334
    %v1346 = vpack.c.b16 %v1337, %v1336
    %v1347 = vpack.c.b16 %v1339, %v1338
    %1356 = vmatprep.subr.bf16.mxu0 0
    %1357 = vmatpush1.bf16.msra.mxu0 %v1347
    %1358 = vmatprep.subr.bf16.mxu0 0
    %1359 = vmatpush1.bf16.msra.mxu0 %v1346
    %1360 = vmatprep.subr.bf16.mxu0 0
    %1361 = vmatpush1.bf16.msra.mxu0 %v1345
    %1362 = vmatprep.subr.bf16.mxu0 0
    %1363 = vmatpush1.bf16.msra.mxu0 %v1344
    %1364 = vmatprep.subr.bf16.mxu0 0
    %1365 = vmatpush1.bf16.msra.mxu0 %v1343
    %1366 = vmatprep.subr.bf16.mxu0 0
    %1367 = vmatpush1.bf16.msra.mxu0 %v1342
    %1368 = vmatprep.subr.bf16.mxu0 0
    %1369 = vmatpush1.bf16.msra.mxu0 %v1341
    %1370 = vmatprep.subr.bf16.mxu0 0
    %1371 = vmatpush1.bf16.msra.mxu0 %v1340
    %1372 = vmatprep.subr.bf16.mxu0 0
    %1373 = vmatpush2.bf16.msra.mxu0 0
    %1374 = vmatprep.subr.bf16.mxu0 0
    %1375 = vmatpush2.bf16.msra.mxu0 0
    %1376 = vmatprep.subr.bf16.mxu0 0
    %1377 = vmatpush2.bf16.msra.mxu0 0
    %1378 = vmatprep.subr.bf16.mxu0 0
    %1379 = vmatpush2.bf16.msra.mxu0 0
    %1380 = vmatprep.subr.bf16.mxu0 0
    %1381 = vmatpush2.bf16.msra.mxu0 0
    %1382 = vmatprep.subr.bf16.mxu0 0
    %1383 = vmatpush2.bf16.msra.mxu0 0
    %1384 = vmatprep.subr.bf16.mxu0 0
    %1385 = vmatpush2.bf16.msra.mxu0 0
    %1386 = vmatprep.subr.bf16.mxu0 0
    %1387 = vmatpush2.bf16.msra.mxu0 0
    %1388 = vmatprep.mubr.bf16.mxu0 0
    %1389 = vmatmul.mubr.bf16.gmra.mxu0 %v1277
    %v1390 = vpop.f32.mrf.mxu0
    %v1391 = vadd.f32 %v1306, %v1390
    %v1392 = vpop.f32.mrf.mxu0
    %v1393 = vpop.f32.mrf.mxu0
    %v1394 = vadd.f32 %v1306, %v1393
    %v1395 = vpop.f32.mrf.mxu0
    %1396 = vmatprep.mubr.bf16.mxu0 0
    %1397 = vmatmul.mubr.bf16.gmra.mxu0 %v1278
    %v1398 = vpop.f32.mrf.mxu0
    %v1399 = vadd.f32 %v1306, %v1398
    %v1400 = vpop.f32.mrf.mxu0
    %v1401 = vpop.f32.mrf.mxu0
    %v1402 = vadd.f32 %v1306, %v1401
    %v1403 = vpop.f32.mrf.mxu0
    %1404 = vmatprep.mubr.bf16.mxu0 0
    %1405 = vmatmul.mubr.bf16.gmra.mxu0 %v1279
    %v1406 = vpop.f32.mrf.mxu0
    %v1407 = vadd.f32 %v1306, %v1406
    %v1408 = vpop.f32.mrf.mxu0
    %v1409 = vpop.f32.mrf.mxu0
    %v1410 = vadd.f32 %v1306, %v1409
    %v1411 = vpop.f32.mrf.mxu0
    %1412 = vmatprep.mubr.bf16.mxu0 0
    %1413 = vmatmul.mubr.bf16.gmra.mxu0 %v1280
    %v1414 = vpop.f32.mrf.mxu0
    %v1415 = vadd.f32 %v1306, %v1414
    %v1416 = vpop.f32.mrf.mxu0
    %v1417 = vpop.f32.mrf.mxu0
    %v1418 = vadd.f32 %v1306, %v1417
    %v1419 = vpop.f32.mrf.mxu0
    %1420 = vmatprep.mubr.bf16.mxu0 0
    %1421 = vmatmul.mubr.bf16.gmra.mxu0 %v1281
    %v1422 = vpop.f32.mrf.mxu0
    %v1423 = vadd.f32 %v1306, %v1422
    %v1424 = vpop.f32.mrf.mxu0
    %v1425 = vpop.f32.mrf.mxu0
    %v1426 = vadd.f32 %v1306, %v1425
    %v1427 = vpop.f32.mrf.mxu0
    %1428 = vmatprep.mubr.bf16.mxu0 0
    %1429 = vmatmul.mubr.bf16.gmra.mxu0 %v1282
    %v1430 = vpop.f32.mrf.mxu0
    %v1431 = vadd.f32 %v1306, %v1430
    %v1432 = vpop.f32.mrf.mxu0
    %v1433 = vpop.f32.mrf.mxu0
    %v1434 = vadd.f32 %v1306, %v1433
    %v1435 = vpop.f32.mrf.mxu0
    %1436 = vmatprep.mubr.bf16.mxu0 0
    %1437 = vmatmul.mubr.bf16.gmra.mxu0 %v1283
    %v1438 = vpop.f32.mrf.mxu0
    %v1439 = vadd.f32 %v1306, %v1438
    %v1440 = vpop.f32.mrf.mxu0
    %v1441 = vpop.f32.mrf.mxu0
    %v1442 = vadd.f32 %v1306, %v1441
    %v1443 = vpop.f32.mrf.mxu0
    %1444 = vmatprep.mubr.bf16.mxu0 0
    %1445 = vmatmul.mubr.bf16.gmra.mxu0 %v1284
    %v1446 = vpop.f32.mrf.mxu0
    %v1447 = vadd.f32 %v1306, %v1446
    %v1448 = vpop.f32.mrf.mxu0
    %v1449 = vpop.f32.mrf.mxu0
    %v1450 = vadd.f32 %v1306, %v1449
    %v1451 = vpop.f32.mrf.mxu0
    %1452 = vdwg.mxu0
    %v1453 = vpack.c.bf16 %v1394, %v1391
    %v1454 = vpack.c.bf16 %v1402, %v1399
    %v1455 = vpack.c.bf16 %v1410, %v1407
    %v1456 = vpack.c.bf16 %v1418, %v1415
    %v1457 = vpack.c.bf16 %v1426, %v1423
    %v1458 = vpack.c.bf16 %v1434, %v1431
    %v1459 = vpack.c.bf16 %v1442, %v1439
    %v1460 = vpack.c.bf16 %v1450, %v1447
    %1461 = vmatprep.subr.bf16.mxu0 0
    %1462 = vmatpush1.bf16.msra.mxu0 %v1460
    %1463 = vmatprep.subr.bf16.mxu0 0
    %1464 = vmatpush1.bf16.msra.mxu0 %v1459
    %1465 = vmatprep.subr.bf16.mxu0 0
    %1466 = vmatpush1.bf16.msra.mxu0 %v1458
    %1467 = vmatprep.subr.bf16.mxu0 0
    %1468 = vmatpush1.bf16.msra.mxu0 %v1457
    %1469 = vmatprep.subr.bf16.mxu0 0
    %1470 = vmatpush1.bf16.msra.mxu0 %v1456
    %1471 = vmatprep.subr.bf16.mxu0 0
    %1472 = vmatpush1.bf16.msra.mxu0 %v1455
    %1473 = vmatprep.subr.bf16.mxu0 0
    %1474 = vmatpush1.bf16.msra.mxu0 %v1454
    %1475 = vmatprep.subr.bf16.mxu0 0
    %1476 = vmatpush1.bf16.msra.mxu0 %v1453
    %1477 = vmatprep.subr.bf16.mxu0 0
    %1478 = vmatpush2.bf16.msra.mxu0 0
    %1479 = vmatprep.subr.bf16.mxu0 0
    %1480 = vmatpush2.bf16.msra.mxu0 0
    %1481 = vmatprep.subr.bf16.mxu0 0
    %1482 = vmatpush2.bf16.msra.mxu0 0
    %1483 = vmatprep.subr.bf16.mxu0 0
    %1484 = vmatpush2.bf16.msra.mxu0 0
    %1485 = vmatprep.subr.bf16.mxu0 0
    %1486 = vmatpush2.bf16.msra.mxu0 0
    %1487 = vmatprep.subr.bf16.mxu0 0
    %1488 = vmatpush2.bf16.msra.mxu0 0
    %1489 = vmatprep.subr.bf16.mxu0 0
    %1490 = vmatpush2.bf16.msra.mxu0 0
    %1491 = vmatprep.subr.bf16.mxu0 0
    %1492 = vmatpush2.bf16.msra.mxu0 0
    %1493 = vmatprep.mubr.bf16.mxu0 0
    %1494 = vmatmul.mubr.bf16.gmra.mxu0 %v916
    %v1495 = vpop.f32.mrf.mxu0
    %v1496 = vadd.f32 0.0, %v1495
    %v1497 = vpop.f32.mrf.mxu0
    %v1498 = vpop.f32.mrf.mxu0
    %v1499 = vadd.f32 0.0, %v1498
    %v1500 = vpop.f32.mrf.mxu0
    %1501 = vmatprep.mubr.bf16.mxu0 0
    %1502 = vmatmul.mubr.bf16.gmra.mxu0 %v917
    %v1503 = vpop.f32.mrf.mxu0
    %v1504 = vadd.f32 0.0, %v1503
    %v1505 = vpop.f32.mrf.mxu0
    %v1506 = vpop.f32.mrf.mxu0
    %v1507 = vadd.f32 0.0, %v1506
    %v1508 = vpop.f32.mrf.mxu0
    %1509 = vmatprep.mubr.bf16.mxu0 0
    %1510 = vmatmul.mubr.bf16.gmra.mxu0 %v918
    %v1511 = vpop.f32.mrf.mxu0
    %v1512 = vadd.f32 0.0, %v1511
    %v1513 = vpop.f32.mrf.mxu0
    %v1514 = vpop.f32.mrf.mxu0
    %v1515 = vadd.f32 0.0, %v1514
    %v1516 = vpop.f32.mrf.mxu0
    %1517 = vmatprep.mubr.bf16.mxu0 0
    %1518 = vmatmul.mubr.bf16.gmra.mxu0 %v919
    %v1519 = vpop.f32.mrf.mxu0
    %v1520 = vadd.f32 0.0, %v1519
    %v1521 = vpop.f32.mrf.mxu0
    %v1522 = vpop.f32.mrf.mxu0
    %v1523 = vadd.f32 0.0, %v1522
    %v1524 = vpop.f32.mrf.mxu0
    %1525 = vmatprep.mubr.bf16.mxu0 0
    %1526 = vmatmul.mubr.bf16.gmra.mxu0 %v920
    %v1527 = vpop.f32.mrf.mxu0
    %v1528 = vadd.f32 0.0, %v1527
    %v1529 = vpop.f32.mrf.mxu0
    %v1530 = vpop.f32.mrf.mxu0
    %v1531 = vadd.f32 0.0, %v1530
    %v1532 = vpop.f32.mrf.mxu0
    %1533 = vmatprep.mubr.bf16.mxu0 0
    %1534 = vmatmul.mubr.bf16.gmra.mxu0 %v921
    %v1535 = vpop.f32.mrf.mxu0
    %v1536 = vadd.f32 0.0, %v1535
    %v1537 = vpop.f32.mrf.mxu0
    %v1538 = vpop.f32.mrf.mxu0
    %v1539 = vadd.f32 0.0, %v1538
    %v1540 = vpop.f32.mrf.mxu0
    %1541 = vmatprep.mubr.bf16.mxu0 0
    %1542 = vmatmul.mubr.bf16.gmra.mxu0 %v922
    %v1543 = vpop.f32.mrf.mxu0
    %v1544 = vadd.f32 0.0, %v1543
    %v1545 = vpop.f32.mrf.mxu0
    %v1546 = vpop.f32.mrf.mxu0
    %v1547 = vadd.f32 0.0, %v1546
    %v1548 = vpop.f32.mrf.mxu0
    %1549 = vmatprep.mubr.bf16.mxu0 0
    %1550 = vmatmul.mubr.bf16.gmra.mxu0 %v923
    %v1551 = vpop.f32.mrf.mxu0
    %v1552 = vadd.f32 0.0, %v1551
    %v1553 = vpop.f32.mrf.mxu0
    %v1554 = vpop.f32.mrf.mxu0
    %v1555 = vadd.f32 0.0, %v1554
    %v1556 = vpop.f32.mrf.mxu0
    %1557 = vdwg.mxu0
    %1558 = vst [vmem:[#allocation2] sm:$0xff] %v1496
    %1559 = vst [vmem:[#allocation2 + $0x8] sm:$0xff] %v1499
    %1560 = vst [vmem:[#allocation2 + $0x10] sm:$0xff] %v1504
    %1561 = vst [vmem:[#allocation2 + $0x18] sm:$0xff] %v1507
    %1562 = vst [vmem:[#allocation2 + $0x20] sm:$0xff] %v1512
    %1563 = vst [vmem:[#allocation2 + $0x28] sm:$0xff] %v1515
    %1564 = vst [vmem:[#allocation2 + $0x30] sm:$0xff] %v1520
    %1565 = vst [vmem:[#allocation2 + $0x38] sm:$0xff] %v1523
    %1566 = vst [vmem:[#allocation2 + $0x40] sm:$0xff] %v1528
    %1567 = vst [vmem:[#allocation2 + $0x48] sm:$0xff] %v1531
    %1568 = vst [vmem:[#allocation2 + $0x50] sm:$0xff] %v1536
    %1569 = vst [vmem:[#allocation2 + $0x58] sm:$0xff] %v1539
    %1570 = vst [vmem:[#allocation2 + $0x60] sm:$0xff] %v1544
    %1571 = vst [vmem:[#allocation2 + $0x68] sm:$0xff] %v1547
    %1572 = vst [vmem:[#allocation2 + $0x70] sm:$0xff] %v1552
    %1573 = vst [vmem:[#allocation2 + $0x78] sm:$0xff] %v1555
    // Predicated region
    $region34: #{tpu_custom_call.1} parent=1 // pred_check
      _
    $region35: #{tpu_custom_call.1} parent=1 // pred_check_branch
      %1575 = sbr.rel (0) target = $region37
    $region36: #{tpu_custom_call.1} parent=1 // pred_region
      %s1577 = ssub.s32 2048, 2048
      %1578 = vsyncadd [#allocation3], %s1577
      %s1579 = sshll.u32 [#allocation2], 4
      %s1580 = int_to_ptr.vmem [resolvable:$true] %s1579
      %1585 = dma.vmem_to_hbm [thread:$0]  %s1580, 2048, %s8, [#allocation3], 128, 128, 8
    $region37: #{tpu_custom_call.1} parent=1 // pred_fallthru
      _
    // Predicated region
    $region38: #{tpu_custom_call.1} parent=1 // pred_check
      _
    $region39: #{tpu_custom_call.1} parent=1 // pred_check_branch
      %1587 = sbr.rel (0) target = $region41
    $region40: #{tpu_custom_call.1} parent=1 // pred_region
      %1588 = dma.done [#allocation3], 2048
    $region41: #{tpu_custom_call.1} parent=1 // pred_fallthru
      _
    %1589 = vsyncpa [#allocation3], 1

</llo_original>
